<compile_context>
chip_gen: v5e
topology: v5e:2x2
jax: 0.10.0
libtpu: 0.0.40
codegen_flags: <defaults>
</compile_context>

<pallas_src>
import functools

import jax
import jax.numpy as jnp
from jax.experimental import pallas as pl
from jax.experimental.pallas import tpu as pltpu

_LANE = 128


def _round_up(n, m):
    return ((n + m - 1) // m) * m


# ---------------- fused Pallas kernel ----------------

def _fused_mlp_kernel(x_ref, *refs):
    """refs = (w1..wL, b_packed_ref, o_ref).

    Weights are bf16 (in, out); biases are f32 packed along lanes with
    lane-aligned (multiple-of-128) offsets. ReLU on every layer but the last.
    """
    *w_refs, b_ref, o_ref = refs
    n_layers = len(w_refs)

    x = x_ref[...]                       # (B, in_dims) f32
    off = 0
    for i, w_ref in enumerate(w_refs):
        n_out = w_ref.shape[1]
        y = jnp.dot(x.astype(jnp.bfloat16), w_ref[...],
                    preferred_element_type=jnp.float32)   # f32 accumulation
        y = y + b_ref[:, off:off + n_out]                  # (B, n_out) + (1, n_out)
        x = jnp.maximum(y, 0.0) if i < n_layers - 1 else y
        off += n_out
    o_ref[...] = x                       # lane-dense (B, 128-padded) store


def fused_mlp(x, weights, b_packed):
    B = x.shape[0]
    n_out_pad = weights[-1].shape[1]

    def full_spec(shape):
        # grid-less call: one full-array block per operand, resident in VMEM
        return pl.BlockSpec(shape, lambda: (0,) * len(shape))

    return pl.pallas_call(
        _fused_mlp_kernel,
        out_shape=jax.ShapeDtypeStruct((B, n_out_pad), jnp.float32),
        in_specs=[full_spec(x.shape)]
                 + [full_spec(w.shape) for w in weights]
                 + [full_spec(b_packed.shape)],
        out_specs=full_spec((B, n_out_pad)),
        compiler_params=pltpu.CompilerParams(vmem_limit_bytes=16 * 1024 * 1024),
    )(x, *weights, b_packed)


# ---------------- parameter construction (PyTorch-like Linear init) ----------------

def init_params(key, input_dims, n_actions):
    # ModelSmall: input -> 256 -> 512 -> 512 -> 128 -> n_actions
    dims = [input_dims, 256, 512, 512, 128, n_actions]
    n_pad = _round_up(max(n_actions, _LANE), _LANE)   # lane-dense final layer
    out_dims = dims[1:-1] + [n_pad]

    weights, biases = [], []
    keys = jax.random.split(key, len(dims) - 1)
    for i in range(len(dims) - 1):
        fan_in, fan_out = dims[i], dims[i + 1]
        kw, kb = jax.random.split(keys[i])
        bound = 1.0 / float(fan_in) ** 0.5
        # stored transposed: (in, out), so the kernel computes x @ W + b
        w = jax.random.uniform(kw, (fan_in, fan_out), jnp.float32, -bound, bound)
        b = jax.random.uniform(kb, (fan_out,), jnp.float32, -bound, bound)
        pad_out = out_dims[i]
        if pad_out != fan_out:                         # zero-pad final layer to 128
            w = jnp.pad(w, ((0, 0), (0, pad_out - fan_out)))
            b = jnp.pad(b, (0, pad_out - fan_out))
        weights.append(w.astype(jnp.bfloat16))         # bf16 weights, f32 accumulate
        biases.append(b)

    # one packed bias row: widths 256/512/512/128/128 -> all offsets lane-aligned
    b_packed = jnp.concatenate(biases).reshape(1, -1).astype(jnp.float32)
    return {"weights": weights, "b_packed": b_packed}


# ---------------- full forward (ModelSmall.forward) ----------------

@functools.partial(jax.jit, static_argnames=("n_actions",))
def model_small_forward(params, state, *, n_actions):
    out_pad = fused_mlp(state, params["weights"], params["b_packed"])
    return out_pad[:, :n_actions]


if __name__ == "__main__":
    batch = 8
    input_dims = 32
    n_actions = 4

    key = jax.random.PRNGKey(0)
    k_params, k_x = jax.random.split(key)
    params = init_params(k_params, input_dims, n_actions)
    state = jax.random.normal(k_x, (batch, input_dims), jnp.float32)

    actions = model_small_forward(params, state, n_actions=n_actions)
    jax.block_until_ready(actions)
    assert actions.shape == (batch, n_actions)
    assert actions.dtype == jnp.float32
    print("KERNEL_OK")
</pallas_src>

<mosaic_0001>
module attributes {stable_mosaic.version = 11 : i64} {
  func.func @_fused_mlp_kernel(%arg0: memref<8x32xf32, #tpu.memory_space<vmem>>, %arg1: memref<32x256xbf16, #tpu.memory_space<vmem>>, %arg2: memref<256x512xbf16, #tpu.memory_space<vmem>>, %arg3: memref<512x512xbf16, #tpu.memory_space<vmem>>, %arg4: memref<512x128xbf16, #tpu.memory_space<vmem>>, %arg5: memref<128x128xbf16, #tpu.memory_space<vmem>>, %arg6: memref<1x1536xf32, #tpu.memory_space<vmem>>, %arg7: memref<8x128xf32, #tpu.memory_space<vmem>>) attributes {dimension_semantics = [], scalar_prefetch = 0 : i64, scratch_operands = 0 : i64, tpu.core_type = #tpu.core_type<tc>} {
    %c0 = arith.constant 0 : index
    %c0_0 = arith.constant 0 : index
    %0 = vector.load %arg0[%c0, %c0_0] : memref<8x32xf32, #tpu.memory_space<vmem>>, vector<8x32xf32>
    %1 = arith.truncf %0 : vector<8x32xf32> to vector<8x32xbf16>
    %c0_1 = arith.constant 0 : index
    %c0_2 = arith.constant 0 : index
    %2 = vector.load %arg1[%c0_1, %c0_2] : memref<32x256xbf16, #tpu.memory_space<vmem>>, vector<32x256xbf16>
    %cst = arith.constant dense<0.000000e+00> : vector<8x256xf32>
    %3 = tpu.matmul %1, %2, %cst {dimension_numbers = #tpu.dot_dimension_numbers<[1], [0], [0], [1], [0, 0, 1, 1], [], []>} : vector<8x32xbf16>, vector<32x256xbf16>, vector<8x256xf32> -> vector<8x256xf32>
    %c0_3 = arith.constant 0 : index
    %c0_4 = arith.constant 0 : index
    %4 = vector.load %arg6[%c0_3, %c0_4] : memref<1x1536xf32, #tpu.memory_space<vmem>>, vector<1x256xf32>
    %5 = vector.broadcast %4 : vector<1x256xf32> to vector<8x256xf32>
    %6 = arith.addf %3, %5 : vector<8x256xf32>
    %cst_5 = arith.constant 0.000000e+00 : f32
    %7 = vector.broadcast %cst_5 : f32 to vector<8x256xf32>
    %8 = arith.maximumf %6, %7 : vector<8x256xf32>
    %9 = arith.truncf %8 : vector<8x256xf32> to vector<8x256xbf16>
    %c0_6 = arith.constant 0 : index
    %c0_7 = arith.constant 0 : index
    %10 = vector.load %arg2[%c0_6, %c0_7] : memref<256x512xbf16, #tpu.memory_space<vmem>>, vector<256x512xbf16>
    %cst_8 = arith.constant dense<0.000000e+00> : vector<8x512xf32>
    %11 = tpu.matmul %9, %10, %cst_8 {dimension_numbers = #tpu.dot_dimension_numbers<[1], [0], [0], [1], [0, 0, 1, 1], [], []>} : vector<8x256xbf16>, vector<256x512xbf16>, vector<8x512xf32> -> vector<8x512xf32>
    %c0_9 = arith.constant 0 : index
    %c256 = arith.constant 256 : index
    %12 = vector.load %arg6[%c0_9, %c256] : memref<1x1536xf32, #tpu.memory_space<vmem>>, vector<1x512xf32>
    %13 = vector.broadcast %12 : vector<1x512xf32> to vector<8x512xf32>
    %14 = arith.addf %11, %13 : vector<8x512xf32>
    %cst_10 = arith.constant 0.000000e+00 : f32
    %15 = vector.broadcast %cst_10 : f32 to vector<8x512xf32>
    %16 = arith.maximumf %14, %15 : vector<8x512xf32>
    %17 = arith.truncf %16 : vector<8x512xf32> to vector<8x512xbf16>
    %c0_11 = arith.constant 0 : index
    %c0_12 = arith.constant 0 : index
    %18 = vector.load %arg3[%c0_11, %c0_12] : memref<512x512xbf16, #tpu.memory_space<vmem>>, vector<512x512xbf16>
    %cst_13 = arith.constant dense<0.000000e+00> : vector<8x512xf32>
    %19 = tpu.matmul %17, %18, %cst_13 {dimension_numbers = #tpu.dot_dimension_numbers<[1], [0], [0], [1], [0, 0, 1, 1], [], []>} : vector<8x512xbf16>, vector<512x512xbf16>, vector<8x512xf32> -> vector<8x512xf32>
    %c0_14 = arith.constant 0 : index
    %c768 = arith.constant 768 : index
    %20 = vector.load %arg6[%c0_14, %c768] : memref<1x1536xf32, #tpu.memory_space<vmem>>, vector<1x512xf32>
    %21 = vector.broadcast %20 : vector<1x512xf32> to vector<8x512xf32>
    %22 = arith.addf %19, %21 : vector<8x512xf32>
    %cst_15 = arith.constant 0.000000e+00 : f32
    %23 = vector.broadcast %cst_15 : f32 to vector<8x512xf32>
    %24 = arith.maximumf %22, %23 : vector<8x512xf32>
    %25 = arith.truncf %24 : vector<8x512xf32> to vector<8x512xbf16>
    %c0_16 = arith.constant 0 : index
    %c0_17 = arith.constant 0 : index
    %26 = vector.load %arg4[%c0_16, %c0_17] : memref<512x128xbf16, #tpu.memory_space<vmem>>, vector<512x128xbf16>
    %cst_18 = arith.constant dense<0.000000e+00> : vector<8x128xf32>
    %27 = tpu.matmul %25, %26, %cst_18 {dimension_numbers = #tpu.dot_dimension_numbers<[1], [0], [0], [1], [0, 0, 1, 1], [], []>} : vector<8x512xbf16>, vector<512x128xbf16>, vector<8x128xf32> -> vector<8x128xf32>
    %c0_19 = arith.constant 0 : index
    %c1280 = arith.constant 1280 : index
    %28 = vector.load %arg6[%c0_19, %c1280] : memref<1x1536xf32, #tpu.memory_space<vmem>>, vector<1x128xf32>
    %29 = vector.broadcast %28 : vector<1x128xf32> to vector<8x128xf32>
    %30 = arith.addf %27, %29 : vector<8x128xf32>
    %cst_20 = arith.constant 0.000000e+00 : f32
    %31 = vector.broadcast %cst_20 : f32 to vector<8x128xf32>
    %32 = arith.maximumf %30, %31 : vector<8x128xf32>
    %33 = arith.truncf %32 : vector<8x128xf32> to vector<8x128xbf16>
    %c0_21 = arith.constant 0 : index
    %c0_22 = arith.constant 0 : index
    %34 = vector.load %arg5[%c0_21, %c0_22] : memref<128x128xbf16, #tpu.memory_space<vmem>>, vector<128x128xbf16>
    %cst_23 = arith.constant dense<0.000000e+00> : vector<8x128xf32>
    %35 = tpu.matmul %33, %34, %cst_23 {dimension_numbers = #tpu.dot_dimension_numbers<[1], [0], [0], [1], [0, 0, 1, 1], [], []>} : vector<8x128xbf16>, vector<128x128xbf16>, vector<8x128xf32> -> vector<8x128xf32>
    %c0_24 = arith.constant 0 : index
    %c1408 = arith.constant 1408 : index
    %36 = vector.load %arg6[%c0_24, %c1408] : memref<1x1536xf32, #tpu.memory_space<vmem>>, vector<1x128xf32>
    %37 = vector.broadcast %36 : vector<1x128xf32> to vector<8x128xf32>
    %38 = arith.addf %35, %37 : vector<8x128xf32>
    %c0_25 = arith.constant 0 : index
    %c0_26 = arith.constant 0 : index
    %39 = vector.load %arg7[%c0_25, %c0_26] : memref<8x128xf32, #tpu.memory_space<vmem>>, vector<8x128xf32>
    tpu.vector_store %arg7[%c0_25, %c0_26], %38 {strides = array<i32>} : memref<8x128xf32, #tpu.memory_space<vmem>>, vector<8x128xf32>,
    return
  }
}

</mosaic_0001>

<llo_original>
// kernel: model_small_forward.1
$region0: #{model_small_forward.1}
  #allocation0 [shape = 'u32[]', space=smem, size = 0x4, offset = 0x4, fixed_abs, tag = 'smem constant byte address 0x4 - core index']
  #allocation1 [shape = 'u32[72,128]{1,0:T(1,128)}', space=vmem, size = 0x9000, scoped, tag = 'internal scratch']
  %s0 = inlined_call_operand.hbm [shape: f32[8,32], index: 0, kind: input, shape index: {}]
  %s1 = inlined_call_operand.hbm [shape: bf16[32,256], index: 1, kind: input, shape index: {}]
  %s2 = inlined_call_operand.hbm [shape: bf16[256,512], index: 2, kind: input, shape index: {}]
  %s3 = inlined_call_operand.hbm [shape: bf16[512,512], index: 3, kind: input, shape index: {}]
  %s4 = inlined_call_operand.hbm [shape: bf16[512,128], index: 4, kind: input, shape index: {}]
  %s5 = inlined_call_operand.hbm [shape: bf16[128,128], index: 5, kind: input, shape index: {}]
  %s6 = inlined_call_operand.hbm [shape: f32[1,1536], index: 6, kind: input, shape index: {}]
  %s7 = inlined_call_operand.vmem [shape: f32[8,128], index: 7, kind: output, shape index: {}]
  %s8 = sld [smem:[#allocation0]]
  $region66: #{model_small_forward.1} parent=0
    _
  %s10 = ssub.s32 1, %s8
  %s11 = scalar_select 0, %s10, %s8
  $region1: #{model_small_forward.1} parent=0
    #allocation2 [shape = 'u8[4096]{0}', space=vmem, size = 0x1000, scoped, tag = 'input window, operand 0, single buffered']
    #allocation3 [shape = 's32[1]{0}', space=sflag, size = 0x4, scoped, tag = 'scoped memory for model_small_forward.1']
    #allocation4 [shape = 'u8[16384]{0}', space=vmem, size = 0x4000, scoped, tag = 'input window, operand 1, single buffered']
    #allocation5 [shape = 's32[1]{0}', space=sflag, size = 0x4, scoped, tag = 'scoped memory for model_small_forward.1']
    #allocation6 [shape = 'u8[262144]{0}', space=vmem, size = 0x40000, scoped, tag = 'input window, operand 2, single buffered']
    #allocation7 [shape = 'u8[524288]{0}', space=vmem, size = 0x80000, scoped, tag = 'input window, operand 3, single buffered']
    #allocation8 [shape = 's32[1]{0}', space=sflag, size = 0x4, scoped, tag = 'scoped memory for model_small_forward.1']
    #allocation9 [shape = 'u8[131072]{0}', space=vmem, size = 0x20000, scoped, tag = 'input window, operand 4, single buffered']
    #allocation10 [shape = 'u8[32768]{0}', space=vmem, size = 0x8000, scoped, tag = 'input window, operand 5, single buffered']
    #allocation11 [shape = 's32[1]{0}', space=sflag, size = 0x4, scoped, tag = 'scoped memory for model_small_forward.1']
    #allocation12 [shape = 'u8[6144]{0}', space=vmem, size = 0x1800, scoped, tag = 'input window, operand 6, single buffered']
    %12 = vsyncpa [#allocation3], 0
    %13 = vsyncpa [#allocation5], 0
    %14 = vsyncpa [#allocation8], 0
    %15 = vsyncpa [#allocation11], 0
    // Predicated region
    $region2: #{model_small_forward.1} parent=1 // pred_check
      _
    $region3: #{model_small_forward.1} parent=1 // pred_check_branch
      %17 = sbr.rel (0) target = $region5
    $region4: #{model_small_forward.1} parent=1 // pred_region
      %19 = vsyncadd [#allocation3], 0
      %s21 = sshll.u32 %s0, 4
      %s22 = int_to_ptr.hbm [resolvable:$true] %s21
      %s23 = sshll.u32 [#allocation2], 4
      %s24 = int_to_ptr.vmem [resolvable:$true] %s23
      %26 = dma.hbm_to_vmem [thread:$0]  %s22, 128, %s24, [#allocation3]
    $region5: #{model_small_forward.1} parent=1 // pred_fallthru
      _
    // Predicated region
    $region6: #{model_small_forward.1} parent=1 // pred_check
      _
    $region7: #{model_small_forward.1} parent=1 // pred_check_branch
      %28 = sbr.rel (0) target = $region9
    $region8: #{model_small_forward.1} parent=1 // pred_region
      %30 = vsyncadd [#allocation5], 0
      %s31 = sshll.u32 %s1, 4
      %s32 = int_to_ptr.hbm [resolvable:$true] %s31
      %s33 = sshll.u32 [#allocation4], 4
      %s34 = int_to_ptr.vmem [resolvable:$true] %s33
      %39 = dma.hbm_to_vmem [thread:$0]  %s32, 512, %s34, [#allocation5], 128, 128, 8
    $region9: #{model_small_forward.1} parent=1 // pred_fallthru
      _
    // Predicated region
    $region10: #{model_small_forward.1} parent=1 // pred_check
      _
    $region11: #{model_small_forward.1} parent=1 // pred_check_branch
      %41 = sbr.rel (0) target = $region13
    $region12: #{model_small_forward.1} parent=1 // pred_region
      %43 = vsyncadd [#allocation5], 0
      %s44 = sshll.u32 %s2, 4
      %s45 = int_to_ptr.hbm [resolvable:$true] %s44
      %s46 = sshll.u32 [#allocation6], 4
      %s47 = int_to_ptr.vmem [resolvable:$true] %s46
      %52 = dma.hbm_to_vmem [thread:$0]  %s45, 8192, %s47, [#allocation5], 256, 256, 16
    $region13: #{model_small_forward.1} parent=1 // pred_fallthru
      _
    // Predicated region
    $region14: #{model_small_forward.1} parent=1 // pred_check
      _
    $region15: #{model_small_forward.1} parent=1 // pred_check_branch
      %54 = sbr.rel (0) target = $region17
    $region16: #{model_small_forward.1} parent=1 // pred_region
      %56 = vsyncadd [#allocation8], 0
      %s57 = sshll.u32 %s3, 4
      %s58 = int_to_ptr.hbm [resolvable:$true] %s57
      %s59 = sshll.u32 [#allocation7], 4
      %s60 = int_to_ptr.vmem [resolvable:$true] %s59
      %65 = dma.hbm_to_vmem [thread:$0]  %s58, 16384, %s60, [#allocation8], 256, 256, 16
    $region17: #{model_small_forward.1} parent=1 // pred_fallthru
      _
    // Predicated region
    $region18: #{model_small_forward.1} parent=1 // pred_check
      _
    $region19: #{model_small_forward.1} parent=1 // pred_check_branch
      %67 = sbr.rel (0) target = $region21
    $region20: #{model_small_forward.1} parent=1 // pred_region
      %69 = vsyncadd [#allocation8], 0
      %s70 = sshll.u32 %s4, 4
      %s71 = int_to_ptr.hbm [resolvable:$true] %s70
      %s72 = sshll.u32 [#allocation9], 4
      %s73 = int_to_ptr.vmem [resolvable:$true] %s72
      %78 = dma.hbm_to_vmem [thread:$0]  %s71, 4096, %s73, [#allocation8], 64, 64, 4
    $region21: #{model_small_forward.1} parent=1 // pred_fallthru
      _
    // Predicated region
    $region22: #{model_small_forward.1} parent=1 // pred_check
      _
    $region23: #{model_small_forward.1} parent=1 // pred_check_branch
      %80 = sbr.rel (0) target = $region25
    $region24: #{model_small_forward.1} parent=1 // pred_region
      %82 = vsyncadd [#allocation11], 0
      %s83 = sshll.u32 %s5, 4
      %s84 = int_to_ptr.hbm [resolvable:$true] %s83
      %s85 = sshll.u32 [#allocation10], 4
      %s86 = int_to_ptr.vmem [resolvable:$true] %s85
      %91 = dma.hbm_to_vmem [thread:$0]  %s84, 1024, %s86, [#allocation11], 64, 64, 4
    $region25: #{model_small_forward.1} parent=1 // pred_fallthru
      _
    // Predicated region
    $region26: #{model_small_forward.1} parent=1 // pred_check
      _
    $region27: #{model_small_forward.1} parent=1 // pred_check_branch
      %93 = sbr.rel (0) target = $region29
    $region28: #{model_small_forward.1} parent=1 // pred_region
      %95 = vsyncadd [#allocation11], 0
      %s97 = sshll.u32 %s6, 4
      %s98 = int_to_ptr.hbm [resolvable:$true] %s97
      %s99 = sshll.u32 [#allocation12], 4
      %s100 = int_to_ptr.vmem [resolvable:$true] %s99
      %102 = dma.hbm_to_vmem [thread:$0]  %s98, 192, %s100, [#allocation11]
    $region29: #{model_small_forward.1} parent=1 // pred_fallthru
      _
    // Predicated region
    $region30: #{model_small_forward.1} parent=1 // pred_check
      _
    $region31: #{model_small_forward.1} parent=1 // pred_check_branch
      %104 = sbr.rel (0) target = $region33
    $region32: #{model_small_forward.1} parent=1 // pred_region
      %106 = dma.done [#allocation3], 128
    $region33: #{model_small_forward.1} parent=1 // pred_fallthru
      _
    // Predicated region
    $region34: #{model_small_forward.1} parent=1 // pred_check
      _
    $region35: #{model_small_forward.1} parent=1 // pred_check_branch
      %108 = sbr.rel (0) target = $region37
    $region36: #{model_small_forward.1} parent=1 // pred_region
      %110 = dma.done [#allocation5], 512
    $region37: #{model_small_forward.1} parent=1 // pred_fallthru
      _
    // Predicated region
    $region38: #{model_small_forward.1} parent=1 // pred_check
      _
    $region39: #{model_small_forward.1} parent=1 // pred_check_branch
      %112 = sbr.rel (0) target = $region41
    $region40: #{model_small_forward.1} parent=1 // pred_region
      %114 = dma.done [#allocation5], 8192
    $region41: #{model_small_forward.1} parent=1 // pred_fallthru
      _
    // Predicated region
    $region42: #{model_small_forward.1} parent=1 // pred_check
      _
    $region43: #{model_small_forward.1} parent=1 // pred_check_branch
      %116 = sbr.rel (0) target = $region45
    $region44: #{model_small_forward.1} parent=1 // pred_region
      %118 = dma.done [#allocation8], 16384
    $region45: #{model_small_forward.1} parent=1 // pred_fallthru
      _
    // Predicated region
    $region46: #{model_small_forward.1} parent=1 // pred_check
      _
    $region47: #{model_small_forward.1} parent=1 // pred_check_branch
      %120 = sbr.rel (0) target = $region49
    $region48: #{model_small_forward.1} parent=1 // pred_region
      %122 = dma.done [#allocation8], 4096
    $region49: #{model_small_forward.1} parent=1 // pred_fallthru
      _
    // Predicated region
    $region50: #{model_small_forward.1} parent=1 // pred_check
      _
    $region51: #{model_small_forward.1} parent=1 // pred_check_branch
      %124 = sbr.rel (0) target = $region53
    $region52: #{model_small_forward.1} parent=1 // pred_region
      %126 = dma.done [#allocation11], 1024
    $region53: #{model_small_forward.1} parent=1 // pred_fallthru
      _
    // Predicated region
    $region54: #{model_small_forward.1} parent=1 // pred_check
      _
    $region55: #{model_small_forward.1} parent=1 // pred_check_branch
      %128 = sbr.rel (0) target = $region57
    $region56: #{model_small_forward.1} parent=1 // pred_region
      %130 = dma.done [#allocation11], 192
    $region57: #{model_small_forward.1} parent=1 // pred_fallthru
      _
    %v132 = vld [vmem:[#allocation2] sm:$0xff]
    %v133 = vpack.c.bf16 %v132, %v132
    %v134 = vld [vmem:[#allocation4] sm:$0xff]
    %v135 = vld [vmem:[#allocation4 + $0x8] sm:$0xff]
    %v136 = vld [vmem:[#allocation4 + $0x10] sm:$0xff]
    %v137 = vld [vmem:[#allocation4 + $0x18] sm:$0xff]
    %v138 = vld [vmem:[#allocation12] sm:$0x3]
    %v140 = vperm.slane %v138, 0
    %v141 = vperm.slane %v138, 1
    %v148 = vunpack.c.l.b16 %v134
    %v149 = vunpack.c.h.b16 %v134
    %v150 = vunpack.c.l.b16 %v135
    %v151 = vunpack.c.h.b16 %v135
    %v152 = vunpack.c.l.b16 %v136
    %v153 = vunpack.c.h.b16 %v136
    %v154 = vunpack.c.l.b16 %v137
    %v155 = vunpack.c.h.b16 %v137
    %v156 = vpack.c.b16 %v150, %v148
    %v157 = vpack.c.b16 %v151, %v149
    %v158 = vpack.c.b16 %v154, %v152
    %v159 = vpack.c.b16 %v155, %v153
    %vm164 = vcmask 261120
    %v166 = vsel %vm164, %v133, 0
    %168 = vmatpush.bf16.msra.mxu0 0
    %169 = vmatpush.bf16.msra.mxu0 0
    %170 = vmatpush.bf16.msra.mxu0 0
    %171 = vmatpush.bf16.msra.mxu0 0
    %172 = vmatpush.bf16.msra.mxu0 0
    %173 = vmatpush.bf16.msra.mxu0 0
    %174 = vmatpush.bf16.msra.mxu0 %v158
    %175 = vmatpush.bf16.msra.mxu0 %v156
    %176 = vmatmul.bf16.gmra.mxu0 %v166
    %v177 = vpop.f32.mrf.mxu0
    %v178 = vadd.f32 %v140, %v177
    %v179 = vpop.f32.mrf.mxu0
    %180 = vdwg.mxu0
    %181 = vmatpush.bf16.msra.mxu0 0
    %182 = vmatpush.bf16.msra.mxu0 0
    %183 = vmatpush.bf16.msra.mxu0 0
    %184 = vmatpush.bf16.msra.mxu0 0
    %185 = vmatpush.bf16.msra.mxu0 0
    %186 = vmatpush.bf16.msra.mxu0 0
    %187 = vmatpush.bf16.msra.mxu0 %v159
    %188 = vmatpush.bf16.msra.mxu0 %v157
    %189 = vmatmul.bf16.gmra.mxu0 %v166
    %v190 = vpop.f32.mrf.mxu0
    %v191 = vadd.f32 %v141, %v190
    %v192 = vpop.f32.mrf.mxu0
    %193 = vdwg.mxu0
    %v194 = vmax.f32 %v178, 0.0
    %v195 = vmax.f32 %v191, 0.0
    %v196 = vpack.c.bf16 %v194, %v194
    %v197 = vpack.c.bf16 %v195, %v195
    %v198 = vld [vmem:[#allocation6] sm:$0xff]
    %v199 = vld [vmem:[#allocation6 + $0x8] sm:$0xff]
    %v200 = vld [vmem:[#allocation6 + $0x10] sm:$0xff]
    %v201 = vld [vmem:[#allocation6 + $0x18] sm:$0xff]
    %v202 = vld [vmem:[#allocation6 + $0x20] sm:$0xff]
    %v203 = vld [vmem:[#allocation6 + $0x28] sm:$0xff]
    %v204 = vld [vmem:[#allocation6 + $0x30] sm:$0xff]
    %v205 = vld [vmem:[#allocation6 + $0x38] sm:$0xff]
    %v206 = vld [vmem:[#allocation6 + $0x40] sm:$0xff]
    %v207 = vld [vmem:[#allocation6 + $0x48] sm:$0xff]
    %v208 = vld [vmem:[#allocation6 + $0x50] sm:$0xff]
    %v209 = vld [vmem:[#allocation6 + $0x58] sm:$0xff]
    %v210 = vld [vmem:[#allocation6 + $0x60] sm:$0xff]
    %v211 = vld [vmem:[#allocation6 + $0x68] sm:$0xff]
    %v212 = vld [vmem:[#allocation6 + $0x70] sm:$0xff]
    %v213 = vld [vmem:[#allocation6 + $0x78] sm:$0xff]
    %v214 = vld [vmem:[#allocation6 + $0x80] sm:$0xff]
    %v215 = vld [vmem:[#allocation6 + $0x88] sm:$0xff]
    %v216 = vld [vmem:[#allocation6 + $0x90] sm:$0xff]
    %v217 = vld [vmem:[#allocation6 + $0x98] sm:$0xff]
    %v218 = vld [vmem:[#allocation6 + $0xa0] sm:$0xff]
    %v219 = vld [vmem:[#allocation6 + $0xa8] sm:$0xff]
    %v220 = vld [vmem:[#allocation6 + $0xb0] sm:$0xff]
    %v221 = vld [vmem:[#allocation6 + $0xb8] sm:$0xff]
    %v222 = vld [vmem:[#allocation6 + $0xc0] sm:$0xff]
    %v223 = vld [vmem:[#allocation6 + $0xc8] sm:$0xff]
    %v224 = vld [vmem:[#allocation6 + $0xd0] sm:$0xff]
    %v225 = vld [vmem:[#allocation6 + $0xd8] sm:$0xff]
    %v226 = vld [vmem:[#allocation6 + $0xe0] sm:$0xff]
    %v227 = vld [vmem:[#allocation6 + $0xe8] sm:$0xff]
    %v228 = vld [vmem:[#allocation6 + $0xf0] sm:$0xff]
    %v229 = vld [vmem:[#allocation6 + $0xf8] sm:$0xff]
    %v230 = vld [vmem:[#allocation6 + $0x100] sm:$0xff]
    %v231 = vld [vmem:[#allocation6 + $0x108] sm:$0xff]
    %v232 = vld [vmem:[#allocation6 + $0x110] sm:$0xff]
    %v233 = vld [vmem:[#allocation6 + $0x118] sm:$0xff]
    %v234 = vld [vmem:[#allocation6 + $0x120] sm:$0xff]
    %v235 = vld [vmem:[#allocation6 + $0x128] sm:$0xff]
    %v236 = vld [vmem:[#allocation6 + $0x130] sm:$0xff]
    %v237 = vld [vmem:[#allocation6 + $0x138] sm:$0xff]
    %v238 = vld [vmem:[#allocation6 + $0x140] sm:$0xff]
    %v239 = vld [vmem:[#allocation6 + $0x148] sm:$0xff]
    %v240 = vld [vmem:[#allocation6 + $0x150] sm:$0xff]
    %v241 = vld [vmem:[#allocation6 + $0x158] sm:$0xff]
    %v242 = vld [vmem:[#allocation6 + $0x160] sm:$0xff]
    %v243 = vld [vmem:[#allocation6 + $0x168] sm:$0xff]
    %v244 = vld [vmem:[#allocation6 + $0x170] sm:$0xff]
    %v245 = vld [vmem:[#allocation6 + $0x178] sm:$0xff]
    %v246 = vld [vmem:[#allocation6 + $0x180] sm:$0xff]
    %v247 = vld [vmem:[#allocation6 + $0x188] sm:$0xff]
    %v248 = vld [vmem:[#allocation6 + $0x190] sm:$0xff]
    %v249 = vld [vmem:[#allocation6 + $0x198] sm:$0xff]
    %v250 = vld [vmem:[#allocation6 + $0x1a0] sm:$0xff]
    %v251 = vld [vmem:[#allocation6 + $0x1a8] sm:$0xff]
    %v252 = vld [vmem:[#allocation6 + $0x1b0] sm:$0xff]
    %v253 = vld [vmem:[#allocation6 + $0x1b8] sm:$0xff]
    %v254 = vld [vmem:[#allocation6 + $0x1c0] sm:$0xff]
    %v255 = vld [vmem:[#allocation6 + $0x1c8] sm:$0xff]
    %v256 = vld [vmem:[#allocation6 + $0x1d0] sm:$0xff]
    %v257 = vld [vmem:[#allocation6 + $0x1d8] sm:$0xff]
    %v258 = vld [vmem:[#allocation6 + $0x1e0] sm:$0xff]
    %v259 = vld [vmem:[#allocation6 + $0x1e8] sm:$0xff]
    %v260 = vld [vmem:[#allocation6 + $0x1f0] sm:$0xff]
    %v261 = vld [vmem:[#allocation6 + $0x1f8] sm:$0xff]
    %v262 = vld [vmem:[#allocation12 + $0x2] sm:$0xf]
    %v264 = vperm.slane %v262, 0
    %v265 = vperm.slane %v262, 1
    %v266 = vperm.slane %v262, 2
    %v267 = vperm.slane %v262, 3
    %v336 = vunpack.c.l.b16 %v198
    %v337 = vunpack.c.h.b16 %v198
    %v338 = vunpack.c.l.b16 %v199
    %v339 = vunpack.c.h.b16 %v199
    %v340 = vunpack.c.l.b16 %v200
    %v341 = vunpack.c.h.b16 %v200
    %v342 = vunpack.c.l.b16 %v201
    %v343 = vunpack.c.h.b16 %v201
    %v344 = vunpack.c.l.b16 %v202
    %v345 = vunpack.c.h.b16 %v202
    %v346 = vunpack.c.l.b16 %v203
    %v347 = vunpack.c.h.b16 %v203
    %v348 = vunpack.c.l.b16 %v204
    %v349 = vunpack.c.h.b16 %v204
    %v350 = vunpack.c.l.b16 %v205
    %v351 = vunpack.c.h.b16 %v205
    %v352 = vunpack.c.l.b16 %v206
    %v353 = vunpack.c.h.b16 %v206
    %v354 = vunpack.c.l.b16 %v207
    %v355 = vunpack.c.h.b16 %v207
    %v356 = vunpack.c.l.b16 %v208
    %v357 = vunpack.c.h.b16 %v208
    %v358 = vunpack.c.l.b16 %v209
    %v359 = vunpack.c.h.b16 %v209
    %v360 = vunpack.c.l.b16 %v210
    %v361 = vunpack.c.h.b16 %v210
    %v362 = vunpack.c.l.b16 %v211
    %v363 = vunpack.c.h.b16 %v211
    %v364 = vunpack.c.l.b16 %v212
    %v365 = vunpack.c.h.b16 %v212
    %v366 = vunpack.c.l.b16 %v213
    %v367 = vunpack.c.h.b16 %v213
    %v368 = vunpack.c.l.b16 %v214
    %v369 = vunpack.c.h.b16 %v214
    %v370 = vunpack.c.l.b16 %v215
    %v371 = vunpack.c.h.b16 %v215
    %v372 = vunpack.c.l.b16 %v216
    %v373 = vunpack.c.h.b16 %v216
    %v374 = vunpack.c.l.b16 %v217
    %v375 = vunpack.c.h.b16 %v217
    %v376 = vunpack.c.l.b16 %v218
    %v377 = vunpack.c.h.b16 %v218
    %v378 = vunpack.c.l.b16 %v219
    %v379 = vunpack.c.h.b16 %v219
    %v380 = vunpack.c.l.b16 %v220
    %v381 = vunpack.c.h.b16 %v220
    %v382 = vunpack.c.l.b16 %v221
    %v383 = vunpack.c.h.b16 %v221
    %v384 = vunpack.c.l.b16 %v222
    %v385 = vunpack.c.h.b16 %v222
    %v386 = vunpack.c.l.b16 %v223
    %v387 = vunpack.c.h.b16 %v223
    %v388 = vunpack.c.l.b16 %v224
    %v389 = vunpack.c.h.b16 %v224
    %v390 = vunpack.c.l.b16 %v225
    %v391 = vunpack.c.h.b16 %v225
    %v392 = vunpack.c.l.b16 %v226
    %v393 = vunpack.c.h.b16 %v226
    %v394 = vunpack.c.l.b16 %v227
    %v395 = vunpack.c.h.b16 %v227
    %v396 = vunpack.c.l.b16 %v228
    %v397 = vunpack.c.h.b16 %v228
    %v398 = vunpack.c.l.b16 %v229
    %v399 = vunpack.c.h.b16 %v229
    %v400 = vunpack.c.l.b16 %v230
    %v401 = vunpack.c.h.b16 %v230
    %v402 = vunpack.c.l.b16 %v231
    %v403 = vunpack.c.h.b16 %v231
    %v404 = vunpack.c.l.b16 %v232
    %v405 = vunpack.c.h.b16 %v232
    %v406 = vunpack.c.l.b16 %v233
    %v407 = vunpack.c.h.b16 %v233
    %v408 = vunpack.c.l.b16 %v234
    %v409 = vunpack.c.h.b16 %v234
    %v410 = vunpack.c.l.b16 %v235
    %v411 = vunpack.c.h.b16 %v235
    %v412 = vunpack.c.l.b16 %v236
    %v413 = vunpack.c.h.b16 %v236
    %v414 = vunpack.c.l.b16 %v237
    %v415 = vunpack.c.h.b16 %v237
    %v416 = vunpack.c.l.b16 %v238
    %v417 = vunpack.c.h.b16 %v238
    %v418 = vunpack.c.l.b16 %v239
    %v419 = vunpack.c.h.b16 %v239
    %v420 = vunpack.c.l.b16 %v240
    %v421 = vunpack.c.h.b16 %v240
    %v422 = vunpack.c.l.b16 %v241
    %v423 = vunpack.c.h.b16 %v241
    %v424 = vunpack.c.l.b16 %v242
    %v425 = vunpack.c.h.b16 %v242
    %v426 = vunpack.c.l.b16 %v243
    %v427 = vunpack.c.h.b16 %v243
    %v428 = vunpack.c.l.b16 %v244
    %v429 = vunpack.c.h.b16 %v244
    %v430 = vunpack.c.l.b16 %v245
    %v431 = vunpack.c.h.b16 %v245
    %v432 = vunpack.c.l.b16 %v246
    %v433 = vunpack.c.h.b16 %v246
    %v434 = vunpack.c.l.b16 %v247
    %v435 = vunpack.c.h.b16 %v247
    %v436 = vunpack.c.l.b16 %v248
    %v437 = vunpack.c.h.b16 %v248
    %v438 = vunpack.c.l.b16 %v249
    %v439 = vunpack.c.h.b16 %v249
    %v440 = vunpack.c.l.b16 %v250
    %v441 = vunpack.c.h.b16 %v250
    %v442 = vunpack.c.l.b16 %v251
    %v443 = vunpack.c.h.b16 %v251
    %v444 = vunpack.c.l.b16 %v252
    %v445 = vunpack.c.h.b16 %v252
    %v446 = vunpack.c.l.b16 %v253
    %v447 = vunpack.c.h.b16 %v253
    %v448 = vunpack.c.l.b16 %v254
    %v449 = vunpack.c.h.b16 %v254
    %v450 = vunpack.c.l.b16 %v255
    %v451 = vunpack.c.h.b16 %v255
    %v452 = vunpack.c.l.b16 %v256
    %v453 = vunpack.c.h.b16 %v256
    %v454 = vunpack.c.l.b16 %v257
    %v455 = vunpack.c.h.b16 %v257
    %v456 = vunpack.c.l.b16 %v258
    %v457 = vunpack.c.h.b16 %v258
    %v458 = vunpack.c.l.b16 %v259
    %v459 = vunpack.c.h.b16 %v259
    %v460 = vunpack.c.l.b16 %v260
    %v461 = vunpack.c.h.b16 %v260
    %v462 = vunpack.c.l.b16 %v261
    %v463 = vunpack.c.h.b16 %v261
    %v464 = vpack.c.b16 %v340, %v336
    %v465 = vpack.c.b16 %v341, %v337
    %v466 = vpack.c.b16 %v342, %v338
    %v467 = vpack.c.b16 %v343, %v339
    %v468 = vpack.c.b16 %v348, %v344
    %v469 = vpack.c.b16 %v349, %v345
    %v470 = vpack.c.b16 %v350, %v346
    %v471 = vpack.c.b16 %v351, %v347
    %v472 = vpack.c.b16 %v356, %v352
    %v473 = vpack.c.b16 %v357, %v353
    %v474 = vpack.c.b16 %v358, %v354
    %v475 = vpack.c.b16 %v359, %v355
    %v476 = vpack.c.b16 %v364, %v360
    %v477 = vpack.c.b16 %v365, %v361
    %v478 = vpack.c.b16 %v366, %v362
    %v479 = vpack.c.b16 %v367, %v363
    %v480 = vpack.c.b16 %v372, %v368
    %v481 = vpack.c.b16 %v373, %v369
    %v482 = vpack.c.b16 %v374, %v370
    %v483 = vpack.c.b16 %v375, %v371
    %v484 = vpack.c.b16 %v380, %v376
    %v485 = vpack.c.b16 %v381, %v377
    %v486 = vpack.c.b16 %v382, %v378
    %v487 = vpack.c.b16 %v383, %v379
    %v488 = vpack.c.b16 %v388, %v384
    %v489 = vpack.c.b16 %v389, %v385
    %v490 = vpack.c.b16 %v390, %v386
    %v491 = vpack.c.b16 %v391, %v387
    %v492 = vpack.c.b16 %v396, %v392
    %v493 = vpack.c.b16 %v397, %v393
    %v494 = vpack.c.b16 %v398, %v394
    %v495 = vpack.c.b16 %v399, %v395
    %v496 = vpack.c.b16 %v404, %v400
    %v497 = vpack.c.b16 %v405, %v401
    %v498 = vpack.c.b16 %v406, %v402
    %v499 = vpack.c.b16 %v407, %v403
    %v500 = vpack.c.b16 %v412, %v408
    %v501 = vpack.c.b16 %v413, %v409
    %v502 = vpack.c.b16 %v414, %v410
    %v503 = vpack.c.b16 %v415, %v411
    %v504 = vpack.c.b16 %v420, %v416
    %v505 = vpack.c.b16 %v421, %v417
    %v506 = vpack.c.b16 %v422, %v418
    %v507 = vpack.c.b16 %v423, %v419
    %v508 = vpack.c.b16 %v428, %v424
    %v509 = vpack.c.b16 %v429, %v425
    %v510 = vpack.c.b16 %v430, %v426
    %v511 = vpack.c.b16 %v431, %v427
    %v512 = vpack.c.b16 %v436, %v432
    %v513 = vpack.c.b16 %v437, %v433
    %v514 = vpack.c.b16 %v438, %v434
    %v515 = vpack.c.b16 %v439, %v435
    %v516 = vpack.c.b16 %v444, %v440
    %v517 = vpack.c.b16 %v445, %v441
    %v518 = vpack.c.b16 %v446, %v442
    %v519 = vpack.c.b16 %v447, %v443
    %v520 = vpack.c.b16 %v452, %v448
    %v521 = vpack.c.b16 %v453, %v449
    %v522 = vpack.c.b16 %v454, %v450
    %v523 = vpack.c.b16 %v455, %v451
    %v524 = vpack.c.b16 %v460, %v456
    %v525 = vpack.c.b16 %v461, %v457
    %v526 = vpack.c.b16 %v462, %v458
    %v527 = vpack.c.b16 %v463, %v459
    %592 = vmatpush.bf16.msra.mxu0 %v492
    %593 = vmatpush.bf16.msra.mxu0 %v488
    %594 = vmatpush.bf16.msra.mxu0 %v484
    %595 = vmatpush.bf16.msra.mxu0 %v480
    %596 = vmatpush.bf16.msra.mxu0 %v476
    %597 = vmatpush.bf16.msra.mxu0 %v472
    %598 = vmatpush.bf16.msra.mxu0 %v468
    %599 = vmatpush.bf16.msra.mxu0 %v464
    %600 = vmatmul.bf16.gmra.mxu0 %v196
    %v601 = vpop.f32.mrf.mxu0
    %v602 = vadd.f32 %v264, %v601
    %v603 = vpop.f32.mrf.mxu0
    %604 = vdwg.mxu0
    %605 = vmatpush.bf16.msra.mxu0 %v524
    %606 = vmatpush.bf16.msra.mxu0 %v520
    %607 = vmatpush.bf16.msra.mxu0 %v516
    %608 = vmatpush.bf16.msra.mxu0 %v512
    %609 = vmatpush.bf16.msra.mxu0 %v508
    %610 = vmatpush.bf16.msra.mxu0 %v504
    %611 = vmatpush.bf16.msra.mxu0 %v500
    %612 = vmatpush.bf16.msra.mxu0 %v496
    %613 = vmatmul.bf16.gmra.mxu0 %v197
    %v614 = vpop.f32.mrf.mxu0
    %v615 = vadd.f32 %v602, %v614
    %v616 = vpop.f32.mrf.mxu0
    %617 = vdwg.mxu0
    %618 = vmatpush.bf16.msra.mxu0 %v493
    %619 = vmatpush.bf16.msra.mxu0 %v489
    %620 = vmatpush.bf16.msra.mxu0 %v485
    %621 = vmatpush.bf16.msra.mxu0 %v481
    %622 = vmatpush.bf16.msra.mxu0 %v477
    %623 = vmatpush.bf16.msra.mxu0 %v473
    %624 = vmatpush.bf16.msra.mxu0 %v469
    %625 = vmatpush.bf16.msra.mxu0 %v465
    %626 = vmatmul.bf16.gmra.mxu0 %v196
    %v627 = vpop.f32.mrf.mxu0
    %v628 = vadd.f32 %v265, %v627
    %v629 = vpop.f32.mrf.mxu0
    %630 = vdwg.mxu0
    %631 = vmatpush.bf16.msra.mxu0 %v525
    %632 = vmatpush.bf16.msra.mxu0 %v521
    %633 = vmatpush.bf16.msra.mxu0 %v517
    %634 = vmatpush.bf16.msra.mxu0 %v513
    %635 = vmatpush.bf16.msra.mxu0 %v509
    %636 = vmatpush.bf16.msra.mxu0 %v505
    %637 = vmatpush.bf16.msra.mxu0 %v501
    %638 = vmatpush.bf16.msra.mxu0 %v497
    %639 = vmatmul.bf16.gmra.mxu0 %v197
    %v640 = vpop.f32.mrf.mxu0
    %v641 = vadd.f32 %v628, %v640
    %v642 = vpop.f32.mrf.mxu0
    %643 = vdwg.mxu0
    %644 = vmatpush.bf16.msra.mxu0 %v494
    %645 = vmatpush.bf16.msra.mxu0 %v490
    %646 = vmatpush.bf16.msra.mxu0 %v486
    %647 = vmatpush.bf16.msra.mxu0 %v482
    %648 = vmatpush.bf16.msra.mxu0 %v478
    %649 = vmatpush.bf16.msra.mxu0 %v474
    %650 = vmatpush.bf16.msra.mxu0 %v470
    %651 = vmatpush.bf16.msra.mxu0 %v466
    %652 = vmatmul.bf16.gmra.mxu0 %v196
    %v653 = vpop.f32.mrf.mxu0
    %v654 = vadd.f32 %v266, %v653
    %v655 = vpop.f32.mrf.mxu0
    %656 = vdwg.mxu0
    %657 = vmatpush.bf16.msra.mxu0 %v526
    %658 = vmatpush.bf16.msra.mxu0 %v522
    %659 = vmatpush.bf16.msra.mxu0 %v518
    %660 = vmatpush.bf16.msra.mxu0 %v514
    %661 = vmatpush.bf16.msra.mxu0 %v510
    %662 = vmatpush.bf16.msra.mxu0 %v506
    %663 = vmatpush.bf16.msra.mxu0 %v502
    %664 = vmatpush.bf16.msra.mxu0 %v498
    %665 = vmatmul.bf16.gmra.mxu0 %v197
    %v666 = vpop.f32.mrf.mxu0
    %v667 = vadd.f32 %v654, %v666
    %v668 = vpop.f32.mrf.mxu0
    %669 = vdwg.mxu0
    %670 = vmatpush.bf16.msra.mxu0 %v495
    %671 = vmatpush.bf16.msra.mxu0 %v491
    %672 = vmatpush.bf16.msra.mxu0 %v487
    %673 = vmatpush.bf16.msra.mxu0 %v483
    %674 = vmatpush.bf16.msra.mxu0 %v479
    %675 = vmatpush.bf16.msra.mxu0 %v475
    %676 = vmatpush.bf16.msra.mxu0 %v471
    %677 = vmatpush.bf16.msra.mxu0 %v467
    %678 = vmatmul.bf16.gmra.mxu0 %v196
    %v679 = vpop.f32.mrf.mxu0
    %v680 = vadd.f32 %v267, %v679
    %v681 = vpop.f32.mrf.mxu0
    %682 = vdwg.mxu0
    %683 = vmatpush.bf16.msra.mxu0 %v527
    %684 = vmatpush.bf16.msra.mxu0 %v523
    %685 = vmatpush.bf16.msra.mxu0 %v519
    %686 = vmatpush.bf16.msra.mxu0 %v515
    %687 = vmatpush.bf16.msra.mxu0 %v511
    %688 = vmatpush.bf16.msra.mxu0 %v507
    %689 = vmatpush.bf16.msra.mxu0 %v503
    %690 = vmatpush.bf16.msra.mxu0 %v499
    %691 = vmatmul.bf16.gmra.mxu0 %v197
    %v692 = vpop.f32.mrf.mxu0
    %v693 = vadd.f32 %v680, %v692
    %v694 = vpop.f32.mrf.mxu0
    %695 = vdwg.mxu0
    %v696 = vmax.f32 %v615, 0.0
    %v697 = vmax.f32 %v641, 0.0
    %v698 = vmax.f32 %v667, 0.0
    %v699 = vmax.f32 %v693, 0.0
    %v700 = vpack.c.bf16 %v696, %v696
    %v701 = vpack.c.bf16 %v697, %v697
    %v702 = vpack.c.bf16 %v698, %v698
    %v703 = vpack.c.bf16 %v699, %v699
    %v704 = vld [vmem:[#allocation7] sm:$0xff]
    %v705 = vld [vmem:[#allocation7 + $0x8] sm:$0xff]
    %v706 = vld [vmem:[#allocation7 + $0x10] sm:$0xff]
    %v707 = vld [vmem:[#allocation7 + $0x18] sm:$0xff]
    %v708 = vld [vmem:[#allocation7 + $0x20] sm:$0xff]
    %v709 = vld [vmem:[#allocation7 + $0x28] sm:$0xff]
    %v710 = vld [vmem:[#allocation7 + $0x30] sm:$0xff]
    %v711 = vld [vmem:[#allocation7 + $0x38] sm:$0xff]
    %v712 = vld [vmem:[#allocation7 + $0x40] sm:$0xff]
    %v713 = vld [vmem:[#allocation7 + $0x48] sm:$0xff]
    %v714 = vld [vmem:[#allocation7 + $0x50] sm:$0xff]
    %v715 = vld [vmem:[#allocation7 + $0x58] sm:$0xff]
    %v716 = vld [vmem:[#allocation7 + $0x60] sm:$0xff]
    %v717 = vld [vmem:[#allocation7 + $0x68] sm:$0xff]
    %v718 = vld [vmem:[#allocation7 + $0x70] sm:$0xff]
    %v719 = vld [vmem:[#allocation7 + $0x78] sm:$0xff]
    %v720 = vld [vmem:[#allocation7 + $0x80] sm:$0xff]
    %v721 = vld [vmem:[#allocation7 + $0x88] sm:$0xff]
    %v722 = vld [vmem:[#allocation7 + $0x90] sm:$0xff]
    %v723 = vld [vmem:[#allocation7 + $0x98] sm:$0xff]
    %v724 = vld [vmem:[#allocation7 + $0xa0] sm:$0xff]
    %v725 = vld [vmem:[#allocation7 + $0xa8] sm:$0xff]
    %v726 = vld [vmem:[#allocation7 + $0xb0] sm:$0xff]
    %v727 = vld [vmem:[#allocation7 + $0xb8] sm:$0xff]
    %v728 = vld [vmem:[#allocation7 + $0xc0] sm:$0xff]
    %v729 = vld [vmem:[#allocation7 + $0xc8] sm:$0xff]
    %v730 = vld [vmem:[#allocation7 + $0xd0] sm:$0xff]
    %v731 = vld [vmem:[#allocation7 + $0xd8] sm:$0xff]
    %v732 = vld [vmem:[#allocation7 + $0xe0] sm:$0xff]
    %v733 = vld [vmem:[#allocation7 + $0xe8] sm:$0xff]
    %v734 = vld [vmem:[#allocation7 + $0xf0] sm:$0xff]
    %v735 = vld [vmem:[#allocation7 + $0xf8] sm:$0xff]
    %v736 = vld [vmem:[#allocation7 + $0x100] sm:$0xff]
    %v737 = vld [vmem:[#allocation7 + $0x108] sm:$0xff]
    %v738 = vld [vmem:[#allocation7 + $0x110] sm:$0xff]
    %v739 = vld [vmem:[#allocation7 + $0x118] sm:$0xff]
    %v740 = vld [vmem:[#allocation7 + $0x120] sm:$0xff]
    %v741 = vld [vmem:[#allocation7 + $0x128] sm:$0xff]
    %v742 = vld [vmem:[#allocation7 + $0x130] sm:$0xff]
    %v743 = vld [vmem:[#allocation7 + $0x138] sm:$0xff]
    %v744 = vld [vmem:[#allocation7 + $0x140] sm:$0xff]
    %v745 = vld [vmem:[#allocation7 + $0x148] sm:$0xff]
    %v746 = vld [vmem:[#allocation7 + $0x150] sm:$0xff]
    %v747 = vld [vmem:[#allocation7 + $0x158] sm:$0xff]
    %v748 = vld [vmem:[#allocation7 + $0x160] sm:$0xff]
    %v749 = vld [vmem:[#allocation7 + $0x168] sm:$0xff]
    %v750 = vld [vmem:[#allocation7 + $0x170] sm:$0xff]
    %v751 = vld [vmem:[#allocation7 + $0x178] sm:$0xff]
    %v752 = vld [vmem:[#allocation7 + $0x180] sm:$0xff]
    %v753 = vld [vmem:[#allocation7 + $0x188] sm:$0xff]
    %v754 = vld [vmem:[#allocation7 + $0x190] sm:$0xff]
    %v755 = vld [vmem:[#allocation7 + $0x198] sm:$0xff]
    %v756 = vld [vmem:[#allocation7 + $0x1a0] sm:$0xff]
    %v757 = vld [vmem:[#allocation7 + $0x1a8] sm:$0xff]
    %v758 = vld [vmem:[#allocation7 + $0x1b0] sm:$0xff]
    %v759 = vld [vmem:[#allocation7 + $0x1b8] sm:$0xff]
    %v760 = vld [vmem:[#allocation7 + $0x1c0] sm:$0xff]
    %v761 = vld [vmem:[#allocation7 + $0x1c8] sm:$0xff]
    %v762 = vld [vmem:[#allocation7 + $0x1d0] sm:$0xff]
    %v763 = vld [vmem:[#allocation7 + $0x1d8] sm:$0xff]
    %v764 = vld [vmem:[#allocation7 + $0x1e0] sm:$0xff]
    %v765 = vld [vmem:[#allocation7 + $0x1e8] sm:$0xff]
    %v766 = vld [vmem:[#allocation7 + $0x1f0] sm:$0xff]
    %v767 = vld [vmem:[#allocation7 + $0x1f8] sm:$0xff]
    %v768 = vld [vmem:[#allocation7 + $0x200] sm:$0xff]
    %v769 = vld [vmem:[#allocation7 + $0x208] sm:$0xff]
    %v770 = vld [vmem:[#allocation7 + $0x210] sm:$0xff]
    %v771 = vld [vmem:[#allocation7 + $0x218] sm:$0xff]
    %v772 = vld [vmem:[#allocation7 + $0x220] sm:$0xff]
    %v773 = vld [vmem:[#allocation7 + $0x228] sm:$0xff]
    %v774 = vld [vmem:[#allocation7 + $0x230] sm:$0xff]
    %v775 = vld [vmem:[#allocation7 + $0x238] sm:$0xff]
    %v776 = vld [vmem:[#allocation7 + $0x240] sm:$0xff]
    %v777 = vld [vmem:[#allocation7 + $0x248] sm:$0xff]
    %v778 = vld [vmem:[#allocation7 + $0x250] sm:$0xff]
    %v779 = vld [vmem:[#allocation7 + $0x258] sm:$0xff]
    %v780 = vld [vmem:[#allocation7 + $0x260] sm:$0xff]
    %v781 = vld [vmem:[#allocation7 + $0x268] sm:$0xff]
    %v782 = vld [vmem:[#allocation7 + $0x270] sm:$0xff]
    %v783 = vld [vmem:[#allocation7 + $0x278] sm:$0xff]
    %v784 = vld [vmem:[#allocation7 + $0x280] sm:$0xff]
    %v785 = vld [vmem:[#allocation7 + $0x288] sm:$0xff]
    %v786 = vld [vmem:[#allocation7 + $0x290] sm:$0xff]
    %v787 = vld [vmem:[#allocation7 + $0x298] sm:$0xff]
    %v788 = vld [vmem:[#allocation7 + $0x2a0] sm:$0xff]
    %v789 = vld [vmem:[#allocation7 + $0x2a8] sm:$0xff]
    %v790 = vld [vmem:[#allocation7 + $0x2b0] sm:$0xff]
    %v791 = vld [vmem:[#allocation7 + $0x2b8] sm:$0xff]
    %v792 = vld [vmem:[#allocation7 + $0x2c0] sm:$0xff]
    %v793 = vld [vmem:[#allocation7 + $0x2c8] sm:$0xff]
    %v794 = vld [vmem:[#allocation7 + $0x2d0] sm:$0xff]
    %v795 = vld [vmem:[#allocation7 + $0x2d8] sm:$0xff]
    %v796 = vld [vmem:[#allocation7 + $0x2e0] sm:$0xff]
    %v797 = vld [vmem:[#allocation7 + $0x2e8] sm:$0xff]
    %v798 = vld [vmem:[#allocation7 + $0x2f0] sm:$0xff]
    %v799 = vld [vmem:[#allocation7 + $0x2f8] sm:$0xff]
    %v800 = vld [vmem:[#allocation7 + $0x300] sm:$0xff]
    %v801 = vld [vmem:[#allocation7 + $0x308] sm:$0xff]
    %v802 = vld [vmem:[#allocation7 + $0x310] sm:$0xff]
    %v803 = vld [vmem:[#allocation7 + $0x318] sm:$0xff]
    %v804 = vld [vmem:[#allocation7 + $0x320] sm:$0xff]
    %v805 = vld [vmem:[#allocation7 + $0x328] sm:$0xff]
    %v806 = vld [vmem:[#allocation7 + $0x330] sm:$0xff]
    %v807 = vld [vmem:[#allocation7 + $0x338] sm:$0xff]
    %v808 = vld [vmem:[#allocation7 + $0x340] sm:$0xff]
    %v809 = vld [vmem:[#allocation7 + $0x348] sm:$0xff]
    %v810 = vld [vmem:[#allocation7 + $0x350] sm:$0xff]
    %v811 = vld [vmem:[#allocation7 + $0x358] sm:$0xff]
    %v812 = vld [vmem:[#allocation7 + $0x360] sm:$0xff]
    %v813 = vld [vmem:[#allocation7 + $0x368] sm:$0xff]
    %v814 = vld [vmem:[#allocation7 + $0x370] sm:$0xff]
    %v815 = vld [vmem:[#allocation7 + $0x378] sm:$0xff]
    %v816 = vld [vmem:[#allocation7 + $0x380] sm:$0xff]
    %v817 = vld [vmem:[#allocation7 + $0x388] sm:$0xff]
    %v818 = vld [vmem:[#allocation7 + $0x390] sm:$0xff]
    %v819 = vld [vmem:[#allocation7 + $0x398] sm:$0xff]
    %v820 = vld [vmem:[#allocation7 + $0x3a0] sm:$0xff]
    %v821 = vld [vmem:[#allocation7 + $0x3a8] sm:$0xff]
    %v822 = vld [vmem:[#allocation7 + $0x3b0] sm:$0xff]
    %v823 = vld [vmem:[#allocation7 + $0x3b8] sm:$0xff]
    %v824 = vld [vmem:[#allocation7 + $0x3c0] sm:$0xff]
    %v825 = vld [vmem:[#allocation7 + $0x3c8] sm:$0xff]
    %v826 = vld [vmem:[#allocation7 + $0x3d0] sm:$0xff]
    %v827 = vld [vmem:[#allocation7 + $0x3d8] sm:$0xff]
    %v828 = vld [vmem:[#allocation7 + $0x3e0] sm:$0xff]
    %v829 = vld [vmem:[#allocation7 + $0x3e8] sm:$0xff]
    %v830 = vld [vmem:[#allocation7 + $0x3f0] sm:$0xff]
    %v831 = vld [vmem:[#allocation7 + $0x3f8] sm:$0xff]
    %v832 = vld [vmem:[#allocation12 + $0x6] sm:$0xf]
    %v834 = vperm.slane %v832, 0
    %v835 = vperm.slane %v832, 1
    %v836 = vperm.slane %v832, 2
    %v837 = vperm.slane %v832, 3
    %v970 = vunpack.c.l.b16 %v704
    %v971 = vunpack.c.h.b16 %v704
    %v972 = vunpack.c.l.b16 %v705
    %v973 = vunpack.c.h.b16 %v705
    %v974 = vunpack.c.l.b16 %v706
    %v975 = vunpack.c.h.b16 %v706
    %v976 = vunpack.c.l.b16 %v707
    %v977 = vunpack.c.h.b16 %v707
    %v978 = vunpack.c.l.b16 %v708
    %v979 = vunpack.c.h.b16 %v708
    %v980 = vunpack.c.l.b16 %v709
    %v981 = vunpack.c.h.b16 %v709
    %v982 = vunpack.c.l.b16 %v710
    %v983 = vunpack.c.h.b16 %v710
    %v984 = vunpack.c.l.b16 %v711
    %v985 = vunpack.c.h.b16 %v711
    %v986 = vunpack.c.l.b16 %v712
    %v987 = vunpack.c.h.b16 %v712
    %v988 = vunpack.c.l.b16 %v713
    %v989 = vunpack.c.h.b16 %v713
    %v990 = vunpack.c.l.b16 %v714
    %v991 = vunpack.c.h.b16 %v714
    %v992 = vunpack.c.l.b16 %v715
    %v993 = vunpack.c.h.b16 %v715
    %v994 = vunpack.c.l.b16 %v716
    %v995 = vunpack.c.h.b16 %v716
    %v996 = vunpack.c.l.b16 %v717
    %v997 = vunpack.c.h.b16 %v717
    %v998 = vunpack.c.l.b16 %v718
    %v999 = vunpack.c.h.b16 %v718
    %v1000 = vunpack.c.l.b16 %v719
    %v1001 = vunpack.c.h.b16 %v719
    %v1002 = vunpack.c.l.b16 %v720
    %v1003 = vunpack.c.h.b16 %v720
    %v1004 = vunpack.c.l.b16 %v721
    %v1005 = vunpack.c.h.b16 %v721
    %v1006 = vunpack.c.l.b16 %v722
    %v1007 = vunpack.c.h.b16 %v722
    %v1008 = vunpack.c.l.b16 %v723
    %v1009 = vunpack.c.h.b16 %v723
    %v1010 = vunpack.c.l.b16 %v724
    %v1011 = vunpack.c.h.b16 %v724
    %v1012 = vunpack.c.l.b16 %v725
    %v1013 = vunpack.c.h.b16 %v725
    %v1014 = vunpack.c.l.b16 %v726
    %v1015 = vunpack.c.h.b16 %v726
    %v1016 = vunpack.c.l.b16 %v727
    %v1017 = vunpack.c.h.b16 %v727
    %v1018 = vunpack.c.l.b16 %v728
    %v1019 = vunpack.c.h.b16 %v728
    %v1020 = vunpack.c.l.b16 %v729
    %v1021 = vunpack.c.h.b16 %v729
    %v1022 = vunpack.c.l.b16 %v730
    %v1023 = vunpack.c.h.b16 %v730
    %v1024 = vunpack.c.l.b16 %v731
    %v1025 = vunpack.c.h.b16 %v731
    %v1026 = vunpack.c.l.b16 %v732
    %v1027 = vunpack.c.h.b16 %v732
    %v1028 = vunpack.c.l.b16 %v733
    %v1029 = vunpack.c.h.b16 %v733
    %v1030 = vunpack.c.l.b16 %v734
    %v1031 = vunpack.c.h.b16 %v734
    %v1032 = vunpack.c.l.b16 %v735
    %v1033 = vunpack.c.h.b16 %v735
    %v1034 = vunpack.c.l.b16 %v736
    %v1035 = vunpack.c.h.b16 %v736
    %v1036 = vunpack.c.l.b16 %v737
    %v1037 = vunpack.c.h.b16 %v737
    %v1038 = vunpack.c.l.b16 %v738
    %v1039 = vunpack.c.h.b16 %v738
    %v1040 = vunpack.c.l.b16 %v739
    %v1041 = vunpack.c.h.b16 %v739
    %v1042 = vunpack.c.l.b16 %v740
    %v1043 = vunpack.c.h.b16 %v740
    %v1044 = vunpack.c.l.b16 %v741
    %v1045 = vunpack.c.h.b16 %v741
    %v1046 = vunpack.c.l.b16 %v742
    %v1047 = vunpack.c.h.b16 %v742
    %v1048 = vunpack.c.l.b16 %v743
    %v1049 = vunpack.c.h.b16 %v743
    %v1050 = vunpack.c.l.b16 %v744
    %v1051 = vunpack.c.h.b16 %v744
    %v1052 = vunpack.c.l.b16 %v745
    %v1053 = vunpack.c.h.b16 %v745
    %v1054 = vunpack.c.l.b16 %v746
    %v1055 = vunpack.c.h.b16 %v746
    %v1056 = vunpack.c.l.b16 %v747
    %v1057 = vunpack.c.h.b16 %v747
    %v1058 = vunpack.c.l.b16 %v748
    %v1059 = vunpack.c.h.b16 %v748
    %v1060 = vunpack.c.l.b16 %v749
    %v1061 = vunpack.c.h.b16 %v749
    %v1062 = vunpack.c.l.b16 %v750
    %v1063 = vunpack.c.h.b16 %v750
    %v1064 = vunpack.c.l.b16 %v751
    %v1065 = vunpack.c.h.b16 %v751
    %v1066 = vunpack.c.l.b16 %v752
    %v1067 = vunpack.c.h.b16 %v752
    %v1068 = vunpack.c.l.b16 %v753
    %v1069 = vunpack.c.h.b16 %v753
    %v1070 = vunpack.c.l.b16 %v754
    %v1071 = vunpack.c.h.b16 %v754
    %v1072 = vunpack.c.l.b16 %v755
    %v1073 = vunpack.c.h.b16 %v755
    %v1074 = vunpack.c.l.b16 %v756
    %v1075 = vunpack.c.h.b16 %v756
    %v1076 = vunpack.c.l.b16 %v757
    %v1077 = vunpack.c.h.b16 %v757
    %v1078 = vunpack.c.l.b16 %v758
    %v1079 = vunpack.c.h.b16 %v758
    %v1080 = vunpack.c.l.b16 %v759
    %v1081 = vunpack.c.h.b16 %v759
    %v1082 = vunpack.c.l.b16 %v760
    %v1083 = vunpack.c.h.b16 %v760
    %v1084 = vunpack.c.l.b16 %v761
    %v1085 = vunpack.c.h.b16 %v761
    %v1086 = vunpack.c.l.b16 %v762
    %v1087 = vunpack.c.h.b16 %v762
    %v1088 = vunpack.c.l.b16 %v763
    %v1089 = vunpack.c.h.b16 %v763
    %v1090 = vunpack.c.l.b16 %v764
    %v1091 = vunpack.c.h.b16 %v764
    %v1092 = vunpack.c.l.b16 %v765
    %v1093 = vunpack.c.h.b16 %v765
    %v1094 = vunpack.c.l.b16 %v766
    %v1095 = vunpack.c.h.b16 %v766
    %v1096 = vunpack.c.l.b16 %v767
    %v1097 = vunpack.c.h.b16 %v767
    %v1098 = vunpack.c.l.b16 %v768
    %v1099 = vunpack.c.h.b16 %v768
    %v1100 = vunpack.c.l.b16 %v769
    %v1101 = vunpack.c.h.b16 %v769
    %v1102 = vunpack.c.l.b16 %v770
    %v1103 = vunpack.c.h.b16 %v770
    %v1104 = vunpack.c.l.b16 %v771
    %v1105 = vunpack.c.h.b16 %v771
    %v1106 = vunpack.c.l.b16 %v772
    %v1107 = vunpack.c.h.b16 %v772
    %v1108 = vunpack.c.l.b16 %v773
    %v1109 = vunpack.c.h.b16 %v773
    %v1110 = vunpack.c.l.b16 %v774
    %v1111 = vunpack.c.h.b16 %v774
    %v1112 = vunpack.c.l.b16 %v775
    %v1113 = vunpack.c.h.b16 %v775
    %v1114 = vunpack.c.l.b16 %v776
    %v1115 = vunpack.c.h.b16 %v776
    %v1116 = vunpack.c.l.b16 %v777
    %v1117 = vunpack.c.h.b16 %v777
    %v1118 = vunpack.c.l.b16 %v778
    %v1119 = vunpack.c.h.b16 %v778
    %v1120 = vunpack.c.l.b16 %v779
    %v1121 = vunpack.c.h.b16 %v779
    %v1122 = vunpack.c.l.b16 %v780
    %v1123 = vunpack.c.h.b16 %v780
    %v1124 = vunpack.c.l.b16 %v781
    %v1125 = vunpack.c.h.b16 %v781
    %v1126 = vunpack.c.l.b16 %v782
    %v1127 = vunpack.c.h.b16 %v782
    %v1128 = vunpack.c.l.b16 %v783
    %v1129 = vunpack.c.h.b16 %v783
    %v1130 = vunpack.c.l.b16 %v784
    %v1131 = vunpack.c.h.b16 %v784
    %v1132 = vunpack.c.l.b16 %v785
    %v1133 = vunpack.c.h.b16 %v785
    %v1134 = vunpack.c.l.b16 %v786
    %v1135 = vunpack.c.h.b16 %v786
    %v1136 = vunpack.c.l.b16 %v787
    %v1137 = vunpack.c.h.b16 %v787
    %v1138 = vunpack.c.l.b16 %v788
    %v1139 = vunpack.c.h.b16 %v788
    %v1140 = vunpack.c.l.b16 %v789
    %v1141 = vunpack.c.h.b16 %v789
    %v1142 = vunpack.c.l.b16 %v790
    %v1143 = vunpack.c.h.b16 %v790
    %v1144 = vunpack.c.l.b16 %v791
    %v1145 = vunpack.c.h.b16 %v791
    %v1146 = vunpack.c.l.b16 %v792
    %v1147 = vunpack.c.h.b16 %v792
    %v1148 = vunpack.c.l.b16 %v793
    %v1149 = vunpack.c.h.b16 %v793
    %v1150 = vunpack.c.l.b16 %v794
    %v1151 = vunpack.c.h.b16 %v794
    %v1152 = vunpack.c.l.b16 %v795
    %v1153 = vunpack.c.h.b16 %v795
    %v1154 = vunpack.c.l.b16 %v796
    %v1155 = vunpack.c.h.b16 %v796
    %v1156 = vunpack.c.l.b16 %v797
    %v1157 = vunpack.c.h.b16 %v797
    %v1158 = vunpack.c.l.b16 %v798
    %v1159 = vunpack.c.h.b16 %v798
    %v1160 = vunpack.c.l.b16 %v799
    %v1161 = vunpack.c.h.b16 %v799
    %v1162 = vunpack.c.l.b16 %v800
    %v1163 = vunpack.c.h.b16 %v800
    %v1164 = vunpack.c.l.b16 %v801
    %v1165 = vunpack.c.h.b16 %v801
    %v1166 = vunpack.c.l.b16 %v802
    %v1167 = vunpack.c.h.b16 %v802
    %v1168 = vunpack.c.l.b16 %v803
    %v1169 = vunpack.c.h.b16 %v803
    %v1170 = vunpack.c.l.b16 %v804
    %v1171 = vunpack.c.h.b16 %v804
    %v1172 = vunpack.c.l.b16 %v805
    %v1173 = vunpack.c.h.b16 %v805
    %v1174 = vunpack.c.l.b16 %v806
    %v1175 = vunpack.c.h.b16 %v806
    %v1176 = vunpack.c.l.b16 %v807
    %v1177 = vunpack.c.h.b16 %v807
    %v1178 = vunpack.c.l.b16 %v808
    %v1179 = vunpack.c.h.b16 %v808
    %v1180 = vunpack.c.l.b16 %v809
    %v1181 = vunpack.c.h.b16 %v809
    %v1182 = vunpack.c.l.b16 %v810
    %v1183 = vunpack.c.h.b16 %v810
    %v1184 = vunpack.c.l.b16 %v811
    %v1185 = vunpack.c.h.b16 %v811
    %v1186 = vunpack.c.l.b16 %v812
    %v1187 = vunpack.c.h.b16 %v812
    %v1188 = vunpack.c.l.b16 %v813
    %v1189 = vunpack.c.h.b16 %v813
    %v1190 = vunpack.c.l.b16 %v814
    %v1191 = vunpack.c.h.b16 %v814
    %v1192 = vunpack.c.l.b16 %v815
    %v1193 = vunpack.c.h.b16 %v815
    %v1194 = vunpack.c.l.b16 %v816
    %v1195 = vunpack.c.h.b16 %v816
    %v1196 = vunpack.c.l.b16 %v817
    %v1197 = vunpack.c.h.b16 %v817
    %v1198 = vunpack.c.l.b16 %v818
    %v1199 = vunpack.c.h.b16 %v818
    %v1200 = vunpack.c.l.b16 %v819
    %v1201 = vunpack.c.h.b16 %v819
    %v1202 = vunpack.c.l.b16 %v820
    %v1203 = vunpack.c.h.b16 %v820
    %v1204 = vunpack.c.l.b16 %v821
    %v1205 = vunpack.c.h.b16 %v821
    %v1206 = vunpack.c.l.b16 %v822
    %v1207 = vunpack.c.h.b16 %v822
    %v1208 = vunpack.c.l.b16 %v823
    %v1209 = vunpack.c.h.b16 %v823
    %v1210 = vunpack.c.l.b16 %v824
    %v1211 = vunpack.c.h.b16 %v824
    %v1212 = vunpack.c.l.b16 %v825
    %v1213 = vunpack.c.h.b16 %v825
    %v1214 = vunpack.c.l.b16 %v826
    %v1215 = vunpack.c.h.b16 %v826
    %v1216 = vunpack.c.l.b16 %v827
    %v1217 = vunpack.c.h.b16 %v827
    %v1218 = vunpack.c.l.b16 %v828
    %v1219 = vunpack.c.h.b16 %v828
    %v1220 = vunpack.c.l.b16 %v829
    %v1221 = vunpack.c.h.b16 %v829
    %v1222 = vunpack.c.l.b16 %v830
    %v1223 = vunpack.c.h.b16 %v830
    %v1224 = vunpack.c.l.b16 %v831
    %v1225 = vunpack.c.h.b16 %v831
    %v1226 = vpack.c.b16 %v974, %v970
    %v1227 = vpack.c.b16 %v975, %v971
    %v1228 = vpack.c.b16 %v976, %v972
    %v1229 = vpack.c.b16 %v977, %v973
    %v1230 = vpack.c.b16 %v982, %v978
    %v1231 = vpack.c.b16 %v983, %v979
    %v1232 = vpack.c.b16 %v984, %v980
    %v1233 = vpack.c.b16 %v985, %v981
    %v1234 = vpack.c.b16 %v990, %v986
    %v1235 = vpack.c.b16 %v991, %v987
    %v1236 = vpack.c.b16 %v992, %v988
    %v1237 = vpack.c.b16 %v993, %v989
    %v1238 = vpack.c.b16 %v998, %v994
    %v1239 = vpack.c.b16 %v999, %v995
    %v1240 = vpack.c.b16 %v1000, %v996
    %v1241 = vpack.c.b16 %v1001, %v997
    %v1242 = vpack.c.b16 %v1006, %v1002
    %v1243 = vpack.c.b16 %v1007, %v1003
    %v1244 = vpack.c.b16 %v1008, %v1004
    %v1245 = vpack.c.b16 %v1009, %v1005
    %v1246 = vpack.c.b16 %v1014, %v1010
    %v1247 = vpack.c.b16 %v1015, %v1011
    %v1248 = vpack.c.b16 %v1016, %v1012
    %v1249 = vpack.c.b16 %v1017, %v1013
    %v1250 = vpack.c.b16 %v1022, %v1018
    %v1251 = vpack.c.b16 %v1023, %v1019
    %v1252 = vpack.c.b16 %v1024, %v1020
    %v1253 = vpack.c.b16 %v1025, %v1021
    %v1254 = vpack.c.b16 %v1030, %v1026
    %v1255 = vpack.c.b16 %v1031, %v1027
    %v1256 = vpack.c.b16 %v1032, %v1028
    %v1257 = vpack.c.b16 %v1033, %v1029
    %v1258 = vpack.c.b16 %v1038, %v1034
    %v1259 = vpack.c.b16 %v1039, %v1035
    %v1260 = vpack.c.b16 %v1040, %v1036
    %v1261 = vpack.c.b16 %v1041, %v1037
    %v1262 = vpack.c.b16 %v1046, %v1042
    %v1263 = vpack.c.b16 %v1047, %v1043
    %v1264 = vpack.c.b16 %v1048, %v1044
    %v1265 = vpack.c.b16 %v1049, %v1045
    %v1266 = vpack.c.b16 %v1054, %v1050
    %v1267 = vpack.c.b16 %v1055, %v1051
    %v1268 = vpack.c.b16 %v1056, %v1052
    %v1269 = vpack.c.b16 %v1057, %v1053
    %v1270 = vpack.c.b16 %v1062, %v1058
    %v1271 = vpack.c.b16 %v1063, %v1059
    %v1272 = vpack.c.b16 %v1064, %v1060
    %v1273 = vpack.c.b16 %v1065, %v1061
    %v1274 = vpack.c.b16 %v1070, %v1066
    %v1275 = vpack.c.b16 %v1071, %v1067
    %v1276 = vpack.c.b16 %v1072, %v1068
    %v1277 = vpack.c.b16 %v1073, %v1069
    %v1278 = vpack.c.b16 %v1078, %v1074
    %v1279 = vpack.c.b16 %v1079, %v1075
    %v1280 = vpack.c.b16 %v1080, %v1076
    %v1281 = vpack.c.b16 %v1081, %v1077
    %v1282 = vpack.c.b16 %v1086, %v1082
    %v1283 = vpack.c.b16 %v1087, %v1083
    %v1284 = vpack.c.b16 %v1088, %v1084
    %v1285 = vpack.c.b16 %v1089, %v1085
    %v1286 = vpack.c.b16 %v1094, %v1090
    %v1287 = vpack.c.b16 %v1095, %v1091
    %v1288 = vpack.c.b16 %v1096, %v1092
    %v1289 = vpack.c.b16 %v1097, %v1093
    %v1290 = vpack.c.b16 %v1102, %v1098
    %v1291 = vpack.c.b16 %v1103, %v1099
    %v1292 = vpack.c.b16 %v1104, %v1100
    %v1293 = vpack.c.b16 %v1105, %v1101
    %v1294 = vpack.c.b16 %v1110, %v1106
    %v1295 = vpack.c.b16 %v1111, %v1107
    %v1296 = vpack.c.b16 %v1112, %v1108
    %v1297 = vpack.c.b16 %v1113, %v1109
    %v1298 = vpack.c.b16 %v1118, %v1114
    %v1299 = vpack.c.b16 %v1119, %v1115
    %v1300 = vpack.c.b16 %v1120, %v1116
    %v1301 = vpack.c.b16 %v1121, %v1117
    %v1302 = vpack.c.b16 %v1126, %v1122
    %v1303 = vpack.c.b16 %v1127, %v1123
    %v1304 = vpack.c.b16 %v1128, %v1124
    %v1305 = vpack.c.b16 %v1129, %v1125
    %v1306 = vpack.c.b16 %v1134, %v1130
    %v1307 = vpack.c.b16 %v1135, %v1131
    %v1308 = vpack.c.b16 %v1136, %v1132
    %v1309 = vpack.c.b16 %v1137, %v1133
    %v1310 = vpack.c.b16 %v1142, %v1138
    %v1311 = vpack.c.b16 %v1143, %v1139
    %v1312 = vpack.c.b16 %v1144, %v1140
    %v1313 = vpack.c.b16 %v1145, %v1141
    %v1314 = vpack.c.b16 %v1150, %v1146
    %v1315 = vpack.c.b16 %v1151, %v1147
    %v1316 = vpack.c.b16 %v1152, %v1148
    %v1317 = vpack.c.b16 %v1153, %v1149
    %v1318 = vpack.c.b16 %v1158, %v1154
    %v1319 = vpack.c.b16 %v1159, %v1155
    %v1320 = vpack.c.b16 %v1160, %v1156
    %v1321 = vpack.c.b16 %v1161, %v1157
    %v1322 = vpack.c.b16 %v1166, %v1162
    %v1323 = vpack.c.b16 %v1167, %v1163
    %v1324 = vpack.c.b16 %v1168, %v1164
    %v1325 = vpack.c.b16 %v1169, %v1165
    %v1326 = vpack.c.b16 %v1174, %v1170
    %v1327 = vpack.c.b16 %v1175, %v1171
    %v1328 = vpack.c.b16 %v1176, %v1172
    %v1329 = vpack.c.b16 %v1177, %v1173
    %v1330 = vpack.c.b16 %v1182, %v1178
    %v1331 = vpack.c.b16 %v1183, %v1179
    %v1332 = vpack.c.b16 %v1184, %v1180
    %v1333 = vpack.c.b16 %v1185, %v1181
    %v1334 = vpack.c.b16 %v1190, %v1186
    %v1335 = vpack.c.b16 %v1191, %v1187
    %v1336 = vpack.c.b16 %v1192, %v1188
    %v1337 = vpack.c.b16 %v1193, %v1189
    %v1338 = vpack.c.b16 %v1198, %v1194
    %v1339 = vpack.c.b16 %v1199, %v1195
    %v1340 = vpack.c.b16 %v1200, %v1196
    %v1341 = vpack.c.b16 %v1201, %v1197
    %v1342 = vpack.c.b16 %v1206, %v1202
    %v1343 = vpack.c.b16 %v1207, %v1203
    %v1344 = vpack.c.b16 %v1208, %v1204
    %v1345 = vpack.c.b16 %v1209, %v1205
    %v1346 = vpack.c.b16 %v1214, %v1210
    %v1347 = vpack.c.b16 %v1215, %v1211
    %v1348 = vpack.c.b16 %v1216, %v1212
    %v1349 = vpack.c.b16 %v1217, %v1213
    %v1350 = vpack.c.b16 %v1222, %v1218
    %v1351 = vpack.c.b16 %v1223, %v1219
    %v1352 = vpack.c.b16 %v1224, %v1220
    %v1353 = vpack.c.b16 %v1225, %v1221
    %1482 = vmatpush.bf16.msra.mxu0 %v1254
    %1483 = vmatpush.bf16.msra.mxu0 %v1250
    %1484 = vmatpush.bf16.msra.mxu0 %v1246
    %1485 = vmatpush.bf16.msra.mxu0 %v1242
    %1486 = vmatpush.bf16.msra.mxu0 %v1238
    %1487 = vmatpush.bf16.msra.mxu0 %v1234
    %1488 = vmatpush.bf16.msra.mxu0 %v1230
    %1489 = vmatpush.bf16.msra.mxu0 %v1226
    %1490 = vmatmul.bf16.gmra.mxu0 %v700
    %v1491 = vpop.f32.mrf.mxu0
    %v1492 = vadd.f32 %v834, %v1491
    %v1493 = vpop.f32.mrf.mxu0
    %1494 = vdwg.mxu0
    %1495 = vmatpush.bf16.msra.mxu0 %v1286
    %1496 = vmatpush.bf16.msra.mxu0 %v1282
    %1497 = vmatpush.bf16.msra.mxu0 %v1278
    %1498 = vmatpush.bf16.msra.mxu0 %v1274
    %1499 = vmatpush.bf16.msra.mxu0 %v1270
    %1500 = vmatpush.bf16.msra.mxu0 %v1266
    %1501 = vmatpush.bf16.msra.mxu0 %v1262
    %1502 = vmatpush.bf16.msra.mxu0 %v1258
    %1503 = vmatmul.bf16.gmra.mxu0 %v701
    %v1504 = vpop.f32.mrf.mxu0
    %v1505 = vadd.f32 %v1492, %v1504
    %v1506 = vpop.f32.mrf.mxu0
    %1507 = vdwg.mxu0
    %1508 = vmatpush.bf16.msra.mxu0 %v1318
    %1509 = vmatpush.bf16.msra.mxu0 %v1314
    %1510 = vmatpush.bf16.msra.mxu0 %v1310
    %1511 = vmatpush.bf16.msra.mxu0 %v1306
    %1512 = vmatpush.bf16.msra.mxu0 %v1302
    %1513 = vmatpush.bf16.msra.mxu0 %v1298
    %1514 = vmatpush.bf16.msra.mxu0 %v1294
    %1515 = vmatpush.bf16.msra.mxu0 %v1290
    %1516 = vmatmul.bf16.gmra.mxu0 %v702
    %v1517 = vpop.f32.mrf.mxu0
    %v1518 = vadd.f32 %v1505, %v1517
    %v1519 = vpop.f32.mrf.mxu0
    %1520 = vdwg.mxu0
    %1521 = vmatpush.bf16.msra.mxu0 %v1350
    %1522 = vmatpush.bf16.msra.mxu0 %v1346
    %1523 = vmatpush.bf16.msra.mxu0 %v1342
    %1524 = vmatpush.bf16.msra.mxu0 %v1338
    %1525 = vmatpush.bf16.msra.mxu0 %v1334
    %1526 = vmatpush.bf16.msra.mxu0 %v1330
    %1527 = vmatpush.bf16.msra.mxu0 %v1326
    %1528 = vmatpush.bf16.msra.mxu0 %v1322
    %1529 = vmatmul.bf16.gmra.mxu0 %v703
    %v1530 = vpop.f32.mrf.mxu0
    %v1531 = vadd.f32 %v1518, %v1530
    %v1532 = vpop.f32.mrf.mxu0
    %1533 = vdwg.mxu0
    %1534 = vmatpush.bf16.msra.mxu0 %v1255
    %1535 = vmatpush.bf16.msra.mxu0 %v1251
    %1536 = vmatpush.bf16.msra.mxu0 %v1247
    %1537 = vmatpush.bf16.msra.mxu0 %v1243
    %1538 = vmatpush.bf16.msra.mxu0 %v1239
    %1539 = vmatpush.bf16.msra.mxu0 %v1235
    %1540 = vmatpush.bf16.msra.mxu0 %v1231
    %1541 = vmatpush.bf16.msra.mxu0 %v1227
    %1542 = vmatmul.bf16.gmra.mxu0 %v700
    %v1543 = vpop.f32.mrf.mxu0
    %v1544 = vadd.f32 %v835, %v1543
    %v1545 = vpop.f32.mrf.mxu0
    %1546 = vdwg.mxu0
    %1547 = vmatpush.bf16.msra.mxu0 %v1287
    %1548 = vmatpush.bf16.msra.mxu0 %v1283
    %1549 = vmatpush.bf16.msra.mxu0 %v1279
    %1550 = vmatpush.bf16.msra.mxu0 %v1275
    %1551 = vmatpush.bf16.msra.mxu0 %v1271
    %1552 = vmatpush.bf16.msra.mxu0 %v1267
    %1553 = vmatpush.bf16.msra.mxu0 %v1263
    %1554 = vmatpush.bf16.msra.mxu0 %v1259
    %1555 = vmatmul.bf16.gmra.mxu0 %v701
    %v1556 = vpop.f32.mrf.mxu0
    %v1557 = vadd.f32 %v1544, %v1556
    %v1558 = vpop.f32.mrf.mxu0
    %1559 = vdwg.mxu0
    %1560 = vmatpush.bf16.msra.mxu0 %v1319
    %1561 = vmatpush.bf16.msra.mxu0 %v1315
    %1562 = vmatpush.bf16.msra.mxu0 %v1311
    %1563 = vmatpush.bf16.msra.mxu0 %v1307
    %1564 = vmatpush.bf16.msra.mxu0 %v1303
    %1565 = vmatpush.bf16.msra.mxu0 %v1299
    %1566 = vmatpush.bf16.msra.mxu0 %v1295
    %1567 = vmatpush.bf16.msra.mxu0 %v1291
    %1568 = vmatmul.bf16.gmra.mxu0 %v702
    %v1569 = vpop.f32.mrf.mxu0
    %v1570 = vadd.f32 %v1557, %v1569
    %v1571 = vpop.f32.mrf.mxu0
    %1572 = vdwg.mxu0
    %1573 = vmatpush.bf16.msra.mxu0 %v1351
    %1574 = vmatpush.bf16.msra.mxu0 %v1347
    %1575 = vmatpush.bf16.msra.mxu0 %v1343
    %1576 = vmatpush.bf16.msra.mxu0 %v1339
    %1577 = vmatpush.bf16.msra.mxu0 %v1335
    %1578 = vmatpush.bf16.msra.mxu0 %v1331
    %1579 = vmatpush.bf16.msra.mxu0 %v1327
    %1580 = vmatpush.bf16.msra.mxu0 %v1323
    %1581 = vmatmul.bf16.gmra.mxu0 %v703
    %v1582 = vpop.f32.mrf.mxu0
    %v1583 = vadd.f32 %v1570, %v1582
    %v1584 = vpop.f32.mrf.mxu0
    %1585 = vdwg.mxu0
    %1586 = vmatpush.bf16.msra.mxu0 %v1256
    %1587 = vmatpush.bf16.msra.mxu0 %v1252
    %1588 = vmatpush.bf16.msra.mxu0 %v1248
    %1589 = vmatpush.bf16.msra.mxu0 %v1244
    %1590 = vmatpush.bf16.msra.mxu0 %v1240
    %1591 = vmatpush.bf16.msra.mxu0 %v1236
    %1592 = vmatpush.bf16.msra.mxu0 %v1232
    %1593 = vmatpush.bf16.msra.mxu0 %v1228
    %1594 = vmatmul.bf16.gmra.mxu0 %v700
    %v1595 = vpop.f32.mrf.mxu0
    %v1596 = vadd.f32 %v836, %v1595
    %v1597 = vpop.f32.mrf.mxu0
    %1598 = vdwg.mxu0
    %1599 = vmatpush.bf16.msra.mxu0 %v1288
    %1600 = vmatpush.bf16.msra.mxu0 %v1284
    %1601 = vmatpush.bf16.msra.mxu0 %v1280
    %1602 = vmatpush.bf16.msra.mxu0 %v1276
    %1603 = vmatpush.bf16.msra.mxu0 %v1272
    %1604 = vmatpush.bf16.msra.mxu0 %v1268
    %1605 = vmatpush.bf16.msra.mxu0 %v1264
    %1606 = vmatpush.bf16.msra.mxu0 %v1260
    %1607 = vmatmul.bf16.gmra.mxu0 %v701
    %v1608 = vpop.f32.mrf.mxu0
    %v1609 = vadd.f32 %v1596, %v1608
    %v1610 = vpop.f32.mrf.mxu0
    %1611 = vdwg.mxu0
    %1612 = vmatpush.bf16.msra.mxu0 %v1320
    %1613 = vmatpush.bf16.msra.mxu0 %v1316
    %1614 = vmatpush.bf16.msra.mxu0 %v1312
    %1615 = vmatpush.bf16.msra.mxu0 %v1308
    %1616 = vmatpush.bf16.msra.mxu0 %v1304
    %1617 = vmatpush.bf16.msra.mxu0 %v1300
    %1618 = vmatpush.bf16.msra.mxu0 %v1296
    %1619 = vmatpush.bf16.msra.mxu0 %v1292
    %1620 = vmatmul.bf16.gmra.mxu0 %v702
    %v1621 = vpop.f32.mrf.mxu0
    %v1622 = vadd.f32 %v1609, %v1621
    %v1623 = vpop.f32.mrf.mxu0
    %1624 = vdwg.mxu0
    %1625 = vmatpush.bf16.msra.mxu0 %v1352
    %1626 = vmatpush.bf16.msra.mxu0 %v1348
    %1627 = vmatpush.bf16.msra.mxu0 %v1344
    %1628 = vmatpush.bf16.msra.mxu0 %v1340
    %1629 = vmatpush.bf16.msra.mxu0 %v1336
    %1630 = vmatpush.bf16.msra.mxu0 %v1332
    %1631 = vmatpush.bf16.msra.mxu0 %v1328
    %1632 = vmatpush.bf16.msra.mxu0 %v1324
    %1633 = vmatmul.bf16.gmra.mxu0 %v703
    %v1634 = vpop.f32.mrf.mxu0
    %v1635 = vadd.f32 %v1622, %v1634
    %v1636 = vpop.f32.mrf.mxu0
    %1637 = vdwg.mxu0
    %1638 = vmatpush.bf16.msra.mxu0 %v1257
    %1639 = vmatpush.bf16.msra.mxu0 %v1253
    %1640 = vmatpush.bf16.msra.mxu0 %v1249
    %1641 = vmatpush.bf16.msra.mxu0 %v1245
    %1642 = vmatpush.bf16.msra.mxu0 %v1241
    %1643 = vmatpush.bf16.msra.mxu0 %v1237
    %1644 = vmatpush.bf16.msra.mxu0 %v1233
    %1645 = vmatpush.bf16.msra.mxu0 %v1229
    %1646 = vmatmul.bf16.gmra.mxu0 %v700
    %v1647 = vpop.f32.mrf.mxu0
    %v1648 = vadd.f32 %v837, %v1647
    %v1649 = vpop.f32.mrf.mxu0
    %1650 = vdwg.mxu0
    %1651 = vmatpush.bf16.msra.mxu0 %v1289
    %1652 = vmatpush.bf16.msra.mxu0 %v1285
    %1653 = vmatpush.bf16.msra.mxu0 %v1281
    %1654 = vmatpush.bf16.msra.mxu0 %v1277
    %1655 = vmatpush.bf16.msra.mxu0 %v1273
    %1656 = vmatpush.bf16.msra.mxu0 %v1269
    %1657 = vmatpush.bf16.msra.mxu0 %v1265
    %1658 = vmatpush.bf16.msra.mxu0 %v1261
    %1659 = vmatmul.bf16.gmra.mxu0 %v701
    %v1660 = vpop.f32.mrf.mxu0
    %v1661 = vadd.f32 %v1648, %v1660
    %v1662 = vpop.f32.mrf.mxu0
    %1663 = vdwg.mxu0
    %1664 = vmatpush.bf16.msra.mxu0 %v1321
    %1665 = vmatpush.bf16.msra.mxu0 %v1317
    %1666 = vmatpush.bf16.msra.mxu0 %v1313
    %1667 = vmatpush.bf16.msra.mxu0 %v1309
    %1668 = vmatpush.bf16.msra.mxu0 %v1305
    %1669 = vmatpush.bf16.msra.mxu0 %v1301
    %1670 = vmatpush.bf16.msra.mxu0 %v1297
    %1671 = vmatpush.bf16.msra.mxu0 %v1293
    %1672 = vmatmul.bf16.gmra.mxu0 %v702
    %v1673 = vpop.f32.mrf.mxu0
    %v1674 = vadd.f32 %v1661, %v1673
    %v1675 = vpop.f32.mrf.mxu0
    %1676 = vdwg.mxu0
    %1677 = vmatpush.bf16.msra.mxu0 %v1353
    %1678 = vmatpush.bf16.msra.mxu0 %v1349
    %1679 = vmatpush.bf16.msra.mxu0 %v1345
    %1680 = vmatpush.bf16.msra.mxu0 %v1341
    %1681 = vmatpush.bf16.msra.mxu0 %v1337
    %1682 = vmatpush.bf16.msra.mxu0 %v1333
    %1683 = vmatpush.bf16.msra.mxu0 %v1329
    %1684 = vmatpush.bf16.msra.mxu0 %v1325
    %1685 = vmatmul.bf16.gmra.mxu0 %v703
    %v1686 = vpop.f32.mrf.mxu0
    %v1687 = vadd.f32 %v1674, %v1686
    %v1688 = vpop.f32.mrf.mxu0
    %1689 = vdwg.mxu0
    %v1690 = vmax.f32 %v1531, 0.0
    %v1691 = vmax.f32 %v1583, 0.0
    %v1692 = vmax.f32 %v1635, 0.0
    %v1693 = vmax.f32 %v1687, 0.0
    %v1694 = vpack.c.bf16 %v1690, %v1690
    %v1695 = vpack.c.bf16 %v1691, %v1691
    %v1696 = vpack.c.bf16 %v1692, %v1692
    %v1697 = vpack.c.bf16 %v1693, %v1693
    %v1698 = vld [vmem:[#allocation9] sm:$0xf]
    %v1699 = vld [vmem:[#allocation9 + $0x4] sm:$0xf]
    %v1700 = vld [vmem:[#allocation9 + $0x8] sm:$0xf]
    %v1701 = vld [vmem:[#allocation9 + $0xc] sm:$0xf]
    %v1702 = vld [vmem:[#allocation9 + $0x10] sm:$0xf]
    %v1703 = vld [vmem:[#allocation9 + $0x14] sm:$0xf]
    %v1704 = vld [vmem:[#allocation9 + $0x18] sm:$0xf]
    %v1705 = vld [vmem:[#allocation9 + $0x1c] sm:$0xf]
    %v1706 = vld [vmem:[#allocation9 + $0x20] sm:$0xf]
    %v1707 = vld [vmem:[#allocation9 + $0x24] sm:$0xf]
    %v1708 = vld [vmem:[#allocation9 + $0x28] sm:$0xf]
    %v1709 = vld [vmem:[#allocation9 + $0x2c] sm:$0xf]
    %v1710 = vld [vmem:[#allocation9 + $0x30] sm:$0xf]
    %v1711 = vld [vmem:[#allocation9 + $0x34] sm:$0xf]
    %v1712 = vld [vmem:[#allocation9 + $0x38] sm:$0xf]
    %v1713 = vld [vmem:[#allocation9 + $0x3c] sm:$0xf]
    %v1714 = vld [vmem:[#allocation9 + $0x40] sm:$0xf]
    %v1715 = vld [vmem:[#allocation9 + $0x44] sm:$0xf]
    %v1716 = vld [vmem:[#allocation9 + $0x48] sm:$0xf]
    %v1717 = vld [vmem:[#allocation9 + $0x4c] sm:$0xf]
    %v1718 = vld [vmem:[#allocation9 + $0x50] sm:$0xf]
    %v1719 = vld [vmem:[#allocation9 + $0x54] sm:$0xf]
    %v1720 = vld [vmem:[#allocation9 + $0x58] sm:$0xf]
    %v1721 = vld [vmem:[#allocation9 + $0x5c] sm:$0xf]
    %v1722 = vld [vmem:[#allocation9 + $0x60] sm:$0xf]
    %v1723 = vld [vmem:[#allocation9 + $0x64] sm:$0xf]
    %v1724 = vld [vmem:[#allocation9 + $0x68] sm:$0xf]
    %v1725 = vld [vmem:[#allocation9 + $0x6c] sm:$0xf]
    %v1726 = vld [vmem:[#allocation9 + $0x70] sm:$0xf]
    %v1727 = vld [vmem:[#allocation9 + $0x74] sm:$0xf]
    %v1728 = vld [vmem:[#allocation9 + $0x78] sm:$0xf]
    %v1729 = vld [vmem:[#allocation9 + $0x7c] sm:$0xf]
    %v1730 = vld [vmem:[#allocation9 + $0x80] sm:$0xf]
    %v1731 = vld [vmem:[#allocation9 + $0x84] sm:$0xf]
    %v1732 = vld [vmem:[#allocation9 + $0x88] sm:$0xf]
    %v1733 = vld [vmem:[#allocation9 + $0x8c] sm:$0xf]
    %v1734 = vld [vmem:[#allocation9 + $0x90] sm:$0xf]
    %v1735 = vld [vmem:[#allocation9 + $0x94] sm:$0xf]
    %v1736 = vld [vmem:[#allocation9 + $0x98] sm:$0xf]
    %v1737 = vld [vmem:[#allocation9 + $0x9c] sm:$0xf]
    %v1738 = vld [vmem:[#allocation9 + $0xa0] sm:$0xf]
    %v1739 = vld [vmem:[#allocation9 + $0xa4] sm:$0xf]
    %v1740 = vld [vmem:[#allocation9 + $0xa8] sm:$0xf]
    %v1741 = vld [vmem:[#allocation9 + $0xac] sm:$0xf]
    %v1742 = vld [vmem:[#allocation9 + $0xb0] sm:$0xf]
    %v1743 = vld [vmem:[#allocation9 + $0xb4] sm:$0xf]
    %v1744 = vld [vmem:[#allocation9 + $0xb8] sm:$0xf]
    %v1745 = vld [vmem:[#allocation9 + $0xbc] sm:$0xf]
    %v1746 = vld [vmem:[#allocation9 + $0xc0] sm:$0xf]
    %v1747 = vld [vmem:[#allocation9 + $0xc4] sm:$0xf]
    %v1748 = vld [vmem:[#allocation9 + $0xc8] sm:$0xf]
    %v1749 = vld [vmem:[#allocation9 + $0xcc] sm:$0xf]
    %v1750 = vld [vmem:[#allocation9 + $0xd0] sm:$0xf]
    %v1751 = vld [vmem:[#allocation9 + $0xd4] sm:$0xf]
    %v1752 = vld [vmem:[#allocation9 + $0xd8] sm:$0xf]
    %v1753 = vld [vmem:[#allocation9 + $0xdc] sm:$0xf]
    %v1754 = vld [vmem:[#allocation9 + $0xe0] sm:$0xf]
    %v1755 = vld [vmem:[#allocation9 + $0xe4] sm:$0xf]
    %v1756 = vld [vmem:[#allocation9 + $0xe8] sm:$0xf]
    %v1757 = vld [vmem:[#allocation9 + $0xec] sm:$0xf]
    %v1758 = vld [vmem:[#allocation9 + $0xf0] sm:$0xf]
    %v1759 = vld [vmem:[#allocation9 + $0xf4] sm:$0xf]
    %v1760 = vld [vmem:[#allocation9 + $0xf8] sm:$0xf]
    %v1761 = vld [vmem:[#allocation9 + $0xfc] sm:$0xf]
    %v1762 = vld [vmem:[#allocation12 + $0xa] sm:$0x1]
    %v1764 = vperm.slane %v1762, 0
    %v1830 = vunpack.c.l.b16 %v1698
    %v1831 = vunpack.c.l.b16 %v1699
    %v1832 = vunpack.c.l.b16 %v1700
    %v1833 = vunpack.c.l.b16 %v1701
    %v1834 = vunpack.c.l.b16 %v1702
    %v1835 = vunpack.c.l.b16 %v1703
    %v1836 = vunpack.c.l.b16 %v1704
    %v1837 = vunpack.c.l.b16 %v1705
    %v1838 = vunpack.c.l.b16 %v1706
    %v1839 = vunpack.c.l.b16 %v1707
    %v1840 = vunpack.c.l.b16 %v1708
    %v1841 = vunpack.c.l.b16 %v1709
    %v1842 = vunpack.c.l.b16 %v1710
    %v1843 = vunpack.c.l.b16 %v1711
    %v1844 = vunpack.c.l.b16 %v1712
    %v1845 = vunpack.c.l.b16 %v1713
    %v1846 = vunpack.c.l.b16 %v1714
    %v1847 = vunpack.c.l.b16 %v1715
    %v1848 = vunpack.c.l.b16 %v1716
    %v1849 = vunpack.c.l.b16 %v1717
    %v1850 = vunpack.c.l.b16 %v1718
    %v1851 = vunpack.c.l.b16 %v1719
    %v1852 = vunpack.c.l.b16 %v1720
    %v1853 = vunpack.c.l.b16 %v1721
    %v1854 = vunpack.c.l.b16 %v1722
    %v1855 = vunpack.c.l.b16 %v1723
    %v1856 = vunpack.c.l.b16 %v1724
    %v1857 = vunpack.c.l.b16 %v1725
    %v1858 = vunpack.c.l.b16 %v1726
    %v1859 = vunpack.c.l.b16 %v1727
    %v1860 = vunpack.c.l.b16 %v1728
    %v1861 = vunpack.c.l.b16 %v1729
    %v1862 = vunpack.c.l.b16 %v1730
    %v1863 = vunpack.c.l.b16 %v1731
    %v1864 = vunpack.c.l.b16 %v1732
    %v1865 = vunpack.c.l.b16 %v1733
    %v1866 = vunpack.c.l.b16 %v1734
    %v1867 = vunpack.c.l.b16 %v1735
    %v1868 = vunpack.c.l.b16 %v1736
    %v1869 = vunpack.c.l.b16 %v1737
    %v1870 = vunpack.c.l.b16 %v1738
    %v1871 = vunpack.c.l.b16 %v1739
    %v1872 = vunpack.c.l.b16 %v1740
    %v1873 = vunpack.c.l.b16 %v1741
    %v1874 = vunpack.c.l.b16 %v1742
    %v1875 = vunpack.c.l.b16 %v1743
    %v1876 = vunpack.c.l.b16 %v1744
    %v1877 = vunpack.c.l.b16 %v1745
    %v1878 = vunpack.c.l.b16 %v1746
    %v1879 = vunpack.c.l.b16 %v1747
    %v1880 = vunpack.c.l.b16 %v1748
    %v1881 = vunpack.c.l.b16 %v1749
    %v1882 = vunpack.c.l.b16 %v1750
    %v1883 = vunpack.c.l.b16 %v1751
    %v1884 = vunpack.c.l.b16 %v1752
    %v1885 = vunpack.c.l.b16 %v1753
    %v1886 = vunpack.c.l.b16 %v1754
    %v1887 = vunpack.c.l.b16 %v1755
    %v1888 = vunpack.c.l.b16 %v1756
    %v1889 = vunpack.c.l.b16 %v1757
    %v1890 = vunpack.c.l.b16 %v1758
    %v1891 = vunpack.c.l.b16 %v1759
    %v1892 = vunpack.c.l.b16 %v1760
    %v1893 = vunpack.c.l.b16 %v1761
    %v1894 = vpack.c.b16 %v1831, %v1830
    %v1895 = vpack.c.b16 %v1833, %v1832
    %v1896 = vpack.c.b16 %v1835, %v1834
    %v1897 = vpack.c.b16 %v1837, %v1836
    %v1898 = vpack.c.b16 %v1839, %v1838
    %v1899 = vpack.c.b16 %v1841, %v1840
    %v1900 = vpack.c.b16 %v1843, %v1842
    %v1901 = vpack.c.b16 %v1845, %v1844
    %v1902 = vpack.c.b16 %v1847, %v1846
    %v1903 = vpack.c.b16 %v1849, %v1848
    %v1904 = vpack.c.b16 %v1851, %v1850
    %v1905 = vpack.c.b16 %v1853, %v1852
    %v1906 = vpack.c.b16 %v1855, %v1854
    %v1907 = vpack.c.b16 %v1857, %v1856
    %v1908 = vpack.c.b16 %v1859, %v1858
    %v1909 = vpack.c.b16 %v1861, %v1860
    %v1910 = vpack.c.b16 %v1863, %v1862
    %v1911 = vpack.c.b16 %v1865, %v1864
    %v1912 = vpack.c.b16 %v1867, %v1866
    %v1913 = vpack.c.b16 %v1869, %v1868
    %v1914 = vpack.c.b16 %v1871, %v1870
    %v1915 = vpack.c.b16 %v1873, %v1872
    %v1916 = vpack.c.b16 %v1875, %v1874
    %v1917 = vpack.c.b16 %v1877, %v1876
    %v1918 = vpack.c.b16 %v1879, %v1878
    %v1919 = vpack.c.b16 %v1881, %v1880
    %v1920 = vpack.c.b16 %v1883, %v1882
    %v1921 = vpack.c.b16 %v1885, %v1884
    %v1922 = vpack.c.b16 %v1887, %v1886
    %v1923 = vpack.c.b16 %v1889, %v1888
    %v1924 = vpack.c.b16 %v1891, %v1890
    %v1925 = vpack.c.b16 %v1893, %v1892
    %1958 = vmatpush.bf16.msra.mxu0 %v1901
    %1959 = vmatpush.bf16.msra.mxu0 %v1900
    %1960 = vmatpush.bf16.msra.mxu0 %v1899
    %1961 = vmatpush.bf16.msra.mxu0 %v1898
    %1962 = vmatpush.bf16.msra.mxu0 %v1897
    %1963 = vmatpush.bf16.msra.mxu0 %v1896
    %1964 = vmatpush.bf16.msra.mxu0 %v1895
    %1965 = vmatpush.bf16.msra.mxu0 %v1894
    %1966 = vmatmul.bf16.gmra.mxu0 %v1694
    %v1967 = vpop.f32.mrf.mxu0
    %v1968 = vadd.f32 %v1764, %v1967
    %v1969 = vpop.f32.mrf.mxu0
    %1970 = vdwg.mxu0
    %1971 = vmatpush.bf16.msra.mxu0 %v1909
    %1972 = vmatpush.bf16.msra.mxu0 %v1908
    %1973 = vmatpush.bf16.msra.mxu0 %v1907
    %1974 = vmatpush.bf16.msra.mxu0 %v1906
    %1975 = vmatpush.bf16.msra.mxu0 %v1905
    %1976 = vmatpush.bf16.msra.mxu0 %v1904
    %1977 = vmatpush.bf16.msra.mxu0 %v1903
    %1978 = vmatpush.bf16.msra.mxu0 %v1902
    %1979 = vmatmul.bf16.gmra.mxu0 %v1695
    %v1980 = vpop.f32.mrf.mxu0
    %v1981 = vadd.f32 %v1968, %v1980
    %v1982 = vpop.f32.mrf.mxu0
    %1983 = vdwg.mxu0
    %1984 = vmatpush.bf16.msra.mxu0 %v1917
    %1985 = vmatpush.bf16.msra.mxu0 %v1916
    %1986 = vmatpush.bf16.msra.mxu0 %v1915
    %1987 = vmatpush.bf16.msra.mxu0 %v1914
    %1988 = vmatpush.bf16.msra.mxu0 %v1913
    %1989 = vmatpush.bf16.msra.mxu0 %v1912
    %1990 = vmatpush.bf16.msra.mxu0 %v1911
    %1991 = vmatpush.bf16.msra.mxu0 %v1910
    %1992 = vmatmul.bf16.gmra.mxu0 %v1696
    %v1993 = vpop.f32.mrf.mxu0
    %v1994 = vadd.f32 %v1981, %v1993
    %v1995 = vpop.f32.mrf.mxu0
    %1996 = vdwg.mxu0
    %1997 = vmatpush.bf16.msra.mxu0 %v1925
    %1998 = vmatpush.bf16.msra.mxu0 %v1924
    %1999 = vmatpush.bf16.msra.mxu0 %v1923
    %2000 = vmatpush.bf16.msra.mxu0 %v1922
    %2001 = vmatpush.bf16.msra.mxu0 %v1921
    %2002 = vmatpush.bf16.msra.mxu0 %v1920
    %2003 = vmatpush.bf16.msra.mxu0 %v1919
    %2004 = vmatpush.bf16.msra.mxu0 %v1918
    %2005 = vmatmul.bf16.gmra.mxu0 %v1697
    %v2006 = vpop.f32.mrf.mxu0
    %v2007 = vadd.f32 %v1994, %v2006
    %v2008 = vpop.f32.mrf.mxu0
    %2009 = vdwg.mxu0
    %v2010 = vmax.f32 %v2007, 0.0
    %v2011 = vpack.c.bf16 %v2010, %v2010
    %v2012 = vld [vmem:[#allocation10] sm:$0xf]
    %v2013 = vld [vmem:[#allocation10 + $0x4] sm:$0xf]
    %v2014 = vld [vmem:[#allocation10 + $0x8] sm:$0xf]
    %v2015 = vld [vmem:[#allocation10 + $0xc] sm:$0xf]
    %v2016 = vld [vmem:[#allocation10 + $0x10] sm:$0xf]
    %v2017 = vld [vmem:[#allocation10 + $0x14] sm:$0xf]
    %v2018 = vld [vmem:[#allocation10 + $0x18] sm:$0xf]
    %v2019 = vld [vmem:[#allocation10 + $0x1c] sm:$0xf]
    %v2020 = vld [vmem:[#allocation10 + $0x20] sm:$0xf]
    %v2021 = vld [vmem:[#allocation10 + $0x24] sm:$0xf]
    %v2022 = vld [vmem:[#allocation10 + $0x28] sm:$0xf]
    %v2023 = vld [vmem:[#allocation10 + $0x2c] sm:$0xf]
    %v2024 = vld [vmem:[#allocation10 + $0x30] sm:$0xf]
    %v2025 = vld [vmem:[#allocation10 + $0x34] sm:$0xf]
    %v2026 = vld [vmem:[#allocation10 + $0x38] sm:$0xf]
    %v2027 = vld [vmem:[#allocation10 + $0x3c] sm:$0xf]
    %v2028 = vld [vmem:[#allocation12 + $0xb] sm:$0x1]
    %v2030 = vperm.slane %v2028, 0
    %v2048 = vunpack.c.l.b16 %v2012
    %v2049 = vunpack.c.l.b16 %v2013
    %v2050 = vunpack.c.l.b16 %v2014
    %v2051 = vunpack.c.l.b16 %v2015
    %v2052 = vunpack.c.l.b16 %v2016
    %v2053 = vunpack.c.l.b16 %v2017
    %v2054 = vunpack.c.l.b16 %v2018
    %v2055 = vunpack.c.l.b16 %v2019
    %v2056 = vunpack.c.l.b16 %v2020
    %v2057 = vunpack.c.l.b16 %v2021
    %v2058 = vunpack.c.l.b16 %v2022
    %v2059 = vunpack.c.l.b16 %v2023
    %v2060 = vunpack.c.l.b16 %v2024
    %v2061 = vunpack.c.l.b16 %v2025
    %v2062 = vunpack.c.l.b16 %v2026
    %v2063 = vunpack.c.l.b16 %v2027
    %v2064 = vpack.c.b16 %v2049, %v2048
    %v2065 = vpack.c.b16 %v2051, %v2050
    %v2066 = vpack.c.b16 %v2053, %v2052
    %v2067 = vpack.c.b16 %v2055, %v2054
    %v2068 = vpack.c.b16 %v2057, %v2056
    %v2069 = vpack.c.b16 %v2059, %v2058
    %v2070 = vpack.c.b16 %v2061, %v2060
    %v2071 = vpack.c.b16 %v2063, %v2062
    %2080 = vmatpush.bf16.msra.mxu0 %v2071
    %2081 = vmatpush.bf16.msra.mxu0 %v2070
    %2082 = vmatpush.bf16.msra.mxu0 %v2069
    %2083 = vmatpush.bf16.msra.mxu0 %v2068
    %2084 = vmatpush.bf16.msra.mxu0 %v2067
    %2085 = vmatpush.bf16.msra.mxu0 %v2066
    %2086 = vmatpush.bf16.msra.mxu0 %v2065
    %2087 = vmatpush.bf16.msra.mxu0 %v2064
    %2088 = vmatmul.bf16.gmra.mxu0 %v2011
    %v2089 = vpop.f32.mrf.mxu0
    %v2090 = vadd.f32 %v2030, %v2089
    %v2091 = vpop.f32.mrf.mxu0
    %2092 = vdwg.mxu0
    %2093 = vst [vmem:[%s7] sm:$0xff] %v2090
    // Predicated region
    $region58: #{model_small_forward.1} parent=1 // pred_check
      _
    $region59: #{model_small_forward.1} parent=1 // pred_check_branch
      %2095 = sbr.rel (0) target = $region61
    $region60: #{model_small_forward.1} parent=1 // pred_region
      _
    $region61: #{model_small_forward.1} parent=1 // pred_fallthru
      _
    // Predicated region
    $region62: #{model_small_forward.1} parent=1 // pred_check
      _
    $region63: #{model_small_forward.1} parent=1 // pred_check_branch
      %2097 = sbr.rel (0) target = $region65
    $region64: #{model_small_forward.1} parent=1 // pred_region
      _
    $region65: #{model_small_forward.1} parent=1 // pred_fallthru
      _
    %2098 = vsyncpa [#allocation3], 1
    %2099 = vsyncpa [#allocation5], 1
    %2100 = vsyncpa [#allocation8], 1
    %2101 = vsyncpa [#allocation11], 1

</llo_original>
